<compile_context>
chip_gen: v5e
topology: v5e:2x2
jax: 0.10.0
libtpu: 0.0.40
codegen_flags: <defaults>
</compile_context>

<pallas_src>
import functools

import jax
import jax.numpy as jnp
from jax.experimental import pallas as pl
from jax.experimental.pallas import tpu as pltpu

_EPS = 1e-5


# ----------------------------- Pallas kernel -------------------------------

def _basic_block_kernel(*refs, stride):
    """Fused BasicBlock forward for one image.

    refs (stride == 1): x, w1, b1, w2, b2, o, xpad_scratch, ypad_scratch
    refs (stride  > 1): x, w1, b1, w2, b2, w_ds, b_ds, o, xpad_scratch, ypad_scratch

    w1/w2/w_ds already have the BN scale folded in; b* are the BN shifts.
    """
    if stride == 1:
        (x_ref, w1_ref, b1_ref, w2_ref, b2_ref,
         o_ref, xpad_ref, ypad_ref) = refs
        wds_ref = bds_ref = None
    else:
        (x_ref, w1_ref, b1_ref, w2_ref, b2_ref, wds_ref, bds_ref,
         o_ref, xpad_ref, ypad_ref) = refs

    _, H, W, Cin = x_ref.shape
    _, Ho, Wo, C = o_ref.shape
    mxu_dt = w1_ref.dtype            # bf16 on v6e/v7x, f32 otherwise

    # ---- padded input built in VMEM (halo handled in-kernel, no HBM pad copy)
    xpad_ref[...] = jnp.zeros(xpad_ref.shape, xpad_ref.dtype)
    xpad_ref[1:H + 1, 1:W + 1, :] = x_ref[0]

    # ---- conv1: 3x3, stride s, pad 1 (BN1 scale folded into w1), + shift + ReLU
    acc = jnp.zeros((Ho * Wo, C), jnp.float32)
    for k in range(9):
        dy, dx = divmod(k, 3)
        if stride == 1:
            patch = xpad_ref[dy:dy + Ho, dx:dx + Wo, :]
        else:
            # strided tap load: computes only the needed (Ho, Wo) outputs.
            patch = xpad_ref[pl.ds(dy, Ho, stride), pl.ds(dx, Wo, stride), :]
        lhs = patch.reshape(Ho * Wo, Cin).astype(mxu_dt)
        acc = acc + jnp.dot(lhs, w1_ref[k], preferred_element_type=jnp.float32)
    y = jnp.maximum(acc + b1_ref[...], 0.0)              # f32 epilogue (v5e-safe)

    # ---- conv1 output + halo stays in VMEM (conv chain fused, no HBM round trip)
    ypad_ref[...] = jnp.zeros(ypad_ref.shape, ypad_ref.dtype)
    ypad_ref[1:Ho + 1, 1:Wo + 1, :] = y.reshape(Ho, Wo, C)

    # ---- conv2: 3x3, stride 1, pad 1 (BN2 scale folded into w2), + shift
    acc2 = jnp.zeros((Ho * Wo, C), jnp.float32)
    for k in range(9):
        dy, dx = divmod(k, 3)
        patch = ypad_ref[dy:dy + Ho, dx:dx + Wo, :]
        lhs = patch.reshape(Ho * Wo, C).astype(mxu_dt)
        acc2 = acc2 + jnp.dot(lhs, w2_ref[k], preferred_element_type=jnp.float32)
    z = acc2 + b2_ref[...]

    # ---- identity / fused downsample branch (no separate kernel, no HBM identity)
    if stride == 1:
        idn = x_ref[0].astype(jnp.float32).reshape(Ho * Wo, Cin)   # Cin == C
    else:
        # x[::s, ::s, :] read straight from the padded scratch (interior offset 1)
        xs = xpad_ref[pl.ds(1, Ho, stride), pl.ds(1, Wo, stride), :]
        idn = jnp.dot(xs.reshape(Ho * Wo, Cin).astype(mxu_dt), wds_ref[...],
                      preferred_element_type=jnp.float32) + bds_ref[...]

    out = jnp.maximum(z + idn, 0.0)
    o_ref[0] = out.reshape(Ho, Wo, C).astype(o_ref.dtype)


# ----------------------------- wrapper --------------------------------------

def _bn_fold(gamma, beta, mean, var):
    scale = gamma / jnp.sqrt(var + _EPS)
    shift = beta - mean * scale
    return scale, shift


def basic_block_forward(x_nchw, params, *, stride=1, mxu_dtype=jnp.float32):
    """Equivalent of BasicBlock.forward (twobn=False, inference BN).

    Input/output are PyTorch-style NCHW; internally NHWC (channels on lanes).
    `mxu_dtype=jnp.bfloat16` feeds the MXU bf16 operands (v6e/v7x); all
    epilogue/elementwise math stays f32.
    """
    x = jnp.transpose(x_nchw, (0, 2, 3, 1)).astype(jnp.float32)    # NCHW -> NHWC
    N, H, W, Cin = x.shape
    C = params["w1"].shape[-1]
    assert H % stride == 0 and W % stride == 0
    Ho, Wo = H // stride, W // stride

    # Fold BN scale into conv weights (exact, done once at trace time).
    s1, b1 = _bn_fold(*params["bn1"])
    s2, b2 = _bn_fold(*params["bn2"])
    w1 = (params["w1"] * s1).reshape(9, Cin, C).astype(mxu_dtype)
    w2 = (params["w2"] * s2).reshape(9, C, C).astype(mxu_dtype)
    b1 = b1.reshape(1, C).astype(jnp.float32)
    b2 = b2.reshape(1, C).astype(jnp.float32)

    args = [x, w1, b1, w2, b2]
    in_specs = [
        pl.BlockSpec((1, H, W, Cin), lambda n: (n, 0, 0, 0)),
        pl.BlockSpec((9, Cin, C), lambda n: (0, 0, 0)),
        pl.BlockSpec((1, C), lambda n: (0, 0)),
        pl.BlockSpec((9, C, C), lambda n: (0, 0, 0)),
        pl.BlockSpec((1, C), lambda n: (0, 0)),
    ]
    if stride != 1:
        sd, bd = _bn_fold(*params["bn_ds"])
        wds = (params["w_ds"] * sd).astype(mxu_dtype)
        args += [wds, bd.reshape(1, C).astype(jnp.float32)]
        in_specs += [pl.BlockSpec((Cin, C), lambda n: (0, 0)),
                     pl.BlockSpec((1, C), lambda n: (0, 0))]
    else:
        assert Cin == C, "stride-1 BasicBlock requires in_planes == planes"

    out = pl.pallas_call(
        functools.partial(_basic_block_kernel, stride=stride),
        out_shape=jax.ShapeDtypeStruct((N, Ho, Wo, C), jnp.float32),
        grid=(N,),
        in_specs=in_specs,
        out_specs=pl.BlockSpec((1, Ho, Wo, C), lambda n: (n, 0, 0, 0)),
        scratch_shapes=[pltpu.VMEM((H + 2, W + 2, Cin), jnp.float32),
                        pltpu.VMEM((Ho + 2, Wo + 2, C), jnp.float32)],
        compiler_params=pltpu.CompilerParams(
            dimension_semantics=("parallel",),
            vmem_limit_bytes=32 * 1024 * 1024),
    )(*args)
    return jnp.transpose(out, (0, 3, 1, 2))                        # NHWC -> NCHW


# ----------------------------- reference ------------------------------------

def _ref_forward(x_nchw, params, stride):
    dn = ("NHWC", "HWIO", "NHWC")

    def bn(y, p):
        gamma, beta, mean, var = p
        return (y - mean) / jnp.sqrt(var + _EPS) * gamma + beta

    x = jnp.transpose(x_nchw, (0, 2, 3, 1))
    y = jax.lax.conv_general_dilated(x, params["w1"], (stride, stride),
                                     ((1, 1), (1, 1)), dimension_numbers=dn)
    y = jax.nn.relu(bn(y, params["bn1"]))
    y = jax.lax.conv_general_dilated(y, params["w2"], (1, 1),
                                     ((1, 1), (1, 1)), dimension_numbers=dn)
    y = bn(y, params["bn2"])
    if stride != 1:
        idn = jax.lax.conv_general_dilated(
            x, params["w_ds"].reshape(1, 1, *params["w_ds"].shape),
            (stride, stride), ((0, 0), (0, 0)), dimension_numbers=dn)
        idn = bn(idn, params["bn_ds"])
    else:
        idn = x
    return jnp.transpose(jax.nn.relu(idn + y), (0, 3, 1, 2))


# ----------------------------- main ------------------------------------------

def _init_bn(key, c):
    k1, k2, k3, k4 = jax.random.split(key, 4)
    gamma = jax.random.uniform(k1, (c,), jnp.float32, 0.5, 1.5)
    beta = 0.1 * jax.random.normal(k2, (c,), jnp.float32)
    mean = 0.1 * jax.random.normal(k3, (c,), jnp.float32)
    var = jax.random.uniform(k4, (c,), jnp.float32, 0.5, 1.5)
    return (gamma, beta, mean, var)


if __name__ == "__main__":
    key = jax.random.PRNGKey(0)
    keys = jax.random.split(key, 12)

    N, Cin, H, W, C = 2, 8, 16, 16, 16

    # --- stride=2 block (exercises the fused strided conv + downsample path) ---
    x = jax.random.normal(keys[0], (N, Cin, H, W), jnp.float32)
    params = {
        "w1": 0.1 * jax.random.normal(keys[1], (3, 3, Cin, C), jnp.float32),
        "w2": 0.1 * jax.random.normal(keys[2], (3, 3, C, C), jnp.float32),
        "w_ds": 0.1 * jax.random.normal(keys[3], (Cin, C), jnp.float32),
        "bn1": _init_bn(keys[4], C),
        "bn2": _init_bn(keys[5], C),
        "bn_ds": _init_bn(keys[6], C),
    }
    fwd = jax.jit(functools.partial(basic_block_forward, stride=2))
    out = jax.block_until_ready(fwd(x, params))
    ref = _ref_forward(x, params, 2)
    assert out.shape == (N, C, H // 2, W // 2), out.shape
    assert jnp.allclose(out, ref, atol=1e-3, rtol=1e-3), float(
        jnp.max(jnp.abs(out - ref)))

    # --- stride=1 block (identity shortcut) ---
    x1 = jax.random.normal(keys[7], (N, C, H, W), jnp.float32)
    params1 = {
        "w1": 0.1 * jax.random.normal(keys[8], (3, 3, C, C), jnp.float32),
        "w2": 0.1 * jax.random.normal(keys[9], (3, 3, C, C), jnp.float32),
        "bn1": _init_bn(keys[10], C),
        "bn2": _init_bn(keys[11], C),
    }
    fwd1 = jax.jit(functools.partial(basic_block_forward, stride=1))
    out1 = jax.block_until_ready(fwd1(x1, params1))
    ref1 = _ref_forward(x1, params1, 1)
    assert out1.shape == (N, C, H, W), out1.shape
    assert jnp.allclose(out1, ref1, atol=1e-3, rtol=1e-3), float(
        jnp.max(jnp.abs(out1 - ref1)))

    # --- bf16 MXU-operand mode (v6e/v7x); loose tolerance vs f32 reference ---
    fwd_bf16 = jax.jit(functools.partial(basic_block_forward, stride=2,
                                         mxu_dtype=jnp.bfloat16))
    out_bf = jax.block_until_ready(fwd_bf16(x, params))
    assert jnp.allclose(out_bf, ref, atol=1e-1, rtol=1e-1), float(
        jnp.max(jnp.abs(out_bf - ref)))

    print("KERNEL_OK")
</pallas_src>

<mosaic_0001>
module attributes {stable_mosaic.version = 11 : i64} {
  func.func @_basic_block_kernel(%arg0: i32, %arg1: memref<1x16x16x8xf32, #tpu.memory_space<vmem>>, %arg2: memref<9x8x16xf32, #tpu.memory_space<vmem>>, %arg3: memref<1x16xf32, #tpu.memory_space<vmem>>, %arg4: memref<9x16x16xf32, #tpu.memory_space<vmem>>, %arg5: memref<1x16xf32, #tpu.memory_space<vmem>>, %arg6: memref<8x16xf32, #tpu.memory_space<vmem>>, %arg7: memref<1x16xf32, #tpu.memory_space<vmem>>, %arg8: memref<1x8x8x16xf32, #tpu.memory_space<vmem>>, %arg9: memref<18x18x8xf32, #tpu.memory_space<vmem>>, %arg10: memref<10x10x16xf32, #tpu.memory_space<vmem>>) attributes {dimension_semantics = [#tpu.dimension_semantics<parallel>], iteration_bounds = array<i64: 2>, scalar_prefetch = 0 : i64, scratch_operands = 2 : i64, tpu.core_type = #tpu.core_type<tc>, window_params = [{transform_indices = @transform_0, window_bounds = array<i64: 1, 16, 16, 8>}, {pipeline_mode = #tpu.pipeline_mode<synchronous>, transform_indices = @transform_1, window_bounds = array<i64: 9, 8, 16>}, {pipeline_mode = #tpu.pipeline_mode<synchronous>, transform_indices = @transform_2, window_bounds = array<i64: 1, 16>}, {pipeline_mode = #tpu.pipeline_mode<synchronous>, transform_indices = @transform_3, window_bounds = array<i64: 9, 16, 16>}, {pipeline_mode = #tpu.pipeline_mode<synchronous>, transform_indices = @transform_4, window_bounds = array<i64: 1, 16>}, {pipeline_mode = #tpu.pipeline_mode<synchronous>, transform_indices = @transform_5, window_bounds = array<i64: 8, 16>}, {pipeline_mode = #tpu.pipeline_mode<synchronous>, transform_indices = @transform_6, window_bounds = array<i64: 1, 16>}, {transform_indices = @transform_7, window_bounds = array<i64: 1, 8, 8, 16>}]} {
    %cst = arith.constant 0.000000e+00 : f32
    %0 = vector.broadcast %cst : f32 to vector<18x18x8xf32>
    %c0 = arith.constant 0 : index
    %c0_0 = arith.constant 0 : index
    %c0_1 = arith.constant 0 : index
    %1 = vector.load %arg9[%c0, %c0_0, %c0_1] : memref<18x18x8xf32, #tpu.memory_space<vmem>>, vector<18x18x8xf32>
    tpu.vector_store %arg9[%c0, %c0_0, %c0_1], %0 {strides = array<i32>} : memref<18x18x8xf32, #tpu.memory_space<vmem>>, vector<18x18x8xf32>,
    %c0_2 = arith.constant 0 : index
    %c0_3 = arith.constant 0 : index
    %c0_4 = arith.constant 0 : index
    %c0_5 = arith.constant 0 : index
    %2 = vector.load %arg1[%c0_2, %c0_3, %c0_4, %c0_5] : memref<1x16x16x8xf32, #tpu.memory_space<vmem>>, vector<1x16x16x8xf32>
    %3 = vector.shape_cast %2 : vector<1x16x16x8xf32> to vector<16x16x8xf32>
    %c1 = arith.constant 1 : index
    %c1_6 = arith.constant 1 : index
    %c0_7 = arith.constant 0 : index
    %4 = vector.load %arg9[%c1, %c1_6, %c0_7] : memref<18x18x8xf32, #tpu.memory_space<vmem>>, vector<16x16x8xf32>
    tpu.vector_store %arg9[%c1, %c1_6, %c0_7], %3 {strides = array<i32>} : memref<18x18x8xf32, #tpu.memory_space<vmem>>, vector<16x16x8xf32>,
    %cst_8 = arith.constant 0.000000e+00 : f32
    %5 = vector.broadcast %cst_8 : f32 to vector<64x16xf32>
    %c0_9 = arith.constant 0 : index
    %c0_10 = arith.constant 0 : index
    %c0_11 = arith.constant 0 : index
    %6 = tpu.strided_load %arg9[%c0_9, %c0_10, %c0_11] {strides = array<i32: 2, 2, 1>} : memref<18x18x8xf32, #tpu.memory_space<vmem>>, vector<8x8x8xf32>
    %7 = vector.shape_cast %6 : vector<8x8x8xf32> to vector<64x8xf32>
    %c0_12 = arith.constant 0 : index
    %c0_13 = arith.constant 0 : index
    %c0_14 = arith.constant 0 : index
    %8 = vector.load %arg2[%c0_12, %c0_13, %c0_14] : memref<9x8x16xf32, #tpu.memory_space<vmem>>, vector<1x8x16xf32>
    %9 = vector.shape_cast %8 : vector<1x8x16xf32> to vector<8x16xf32>
    %cst_15 = arith.constant dense<0.000000e+00> : vector<64x16xf32>
    %10 = tpu.matmul %7, %9, %cst_15 {dimension_numbers = #tpu.dot_dimension_numbers<[1], [0], [0], [1], [0, 0, 1, 1], [], []>} : vector<64x8xf32>, vector<8x16xf32>, vector<64x16xf32> -> vector<64x16xf32>
    %11 = arith.addf %5, %10 : vector<64x16xf32>
    %c0_16 = arith.constant 0 : index
    %c1_17 = arith.constant 1 : index
    %c0_18 = arith.constant 0 : index
    %12 = tpu.strided_load %arg9[%c0_16, %c1_17, %c0_18] {strides = array<i32: 2, 2, 1>} : memref<18x18x8xf32, #tpu.memory_space<vmem>>, vector<8x8x8xf32>
    %13 = vector.shape_cast %12 : vector<8x8x8xf32> to vector<64x8xf32>
    %c1_19 = arith.constant 1 : index
    %c0_20 = arith.constant 0 : index
    %c0_21 = arith.constant 0 : index
    %14 = vector.load %arg2[%c1_19, %c0_20, %c0_21] : memref<9x8x16xf32, #tpu.memory_space<vmem>>, vector<1x8x16xf32>
    %15 = vector.shape_cast %14 : vector<1x8x16xf32> to vector<8x16xf32>
    %cst_22 = arith.constant dense<0.000000e+00> : vector<64x16xf32>
    %16 = tpu.matmul %13, %15, %cst_22 {dimension_numbers = #tpu.dot_dimension_numbers<[1], [0], [0], [1], [0, 0, 1, 1], [], []>} : vector<64x8xf32>, vector<8x16xf32>, vector<64x16xf32> -> vector<64x16xf32>
    %17 = arith.addf %11, %16 : vector<64x16xf32>
    %c0_23 = arith.constant 0 : index
    %c2 = arith.constant 2 : index
    %c0_24 = arith.constant 0 : index
    %18 = tpu.strided_load %arg9[%c0_23, %c2, %c0_24] {strides = array<i32: 2, 2, 1>} : memref<18x18x8xf32, #tpu.memory_space<vmem>>, vector<8x8x8xf32>
    %19 = vector.shape_cast %18 : vector<8x8x8xf32> to vector<64x8xf32>
    %c2_25 = arith.constant 2 : index
    %c0_26 = arith.constant 0 : index
    %c0_27 = arith.constant 0 : index
    %20 = vector.load %arg2[%c2_25, %c0_26, %c0_27] : memref<9x8x16xf32, #tpu.memory_space<vmem>>, vector<1x8x16xf32>
    %21 = vector.shape_cast %20 : vector<1x8x16xf32> to vector<8x16xf32>
    %cst_28 = arith.constant dense<0.000000e+00> : vector<64x16xf32>
    %22 = tpu.matmul %19, %21, %cst_28 {dimension_numbers = #tpu.dot_dimension_numbers<[1], [0], [0], [1], [0, 0, 1, 1], [], []>} : vector<64x8xf32>, vector<8x16xf32>, vector<64x16xf32> -> vector<64x16xf32>
    %23 = arith.addf %17, %22 : vector<64x16xf32>
    %c1_29 = arith.constant 1 : index
    %c0_30 = arith.constant 0 : index
    %c0_31 = arith.constant 0 : index
    %24 = tpu.strided_load %arg9[%c1_29, %c0_30, %c0_31] {strides = array<i32: 2, 2, 1>} : memref<18x18x8xf32, #tpu.memory_space<vmem>>, vector<8x8x8xf32>
    %25 = vector.shape_cast %24 : vector<8x8x8xf32> to vector<64x8xf32>
    %c3 = arith.constant 3 : index
    %c0_32 = arith.constant 0 : index
    %c0_33 = arith.constant 0 : index
    %26 = vector.load %arg2[%c3, %c0_32, %c0_33] : memref<9x8x16xf32, #tpu.memory_space<vmem>>, vector<1x8x16xf32>
    %27 = vector.shape_cast %26 : vector<1x8x16xf32> to vector<8x16xf32>
    %cst_34 = arith.constant dense<0.000000e+00> : vector<64x16xf32>
    %28 = tpu.matmul %25, %27, %cst_34 {dimension_numbers = #tpu.dot_dimension_numbers<[1], [0], [0], [1], [0, 0, 1, 1], [], []>} : vector<64x8xf32>, vector<8x16xf32>, vector<64x16xf32> -> vector<64x16xf32>
    %29 = arith.addf %23, %28 : vector<64x16xf32>
    %c1_35 = arith.constant 1 : index
    %c1_36 = arith.constant 1 : index
    %c0_37 = arith.constant 0 : index
    %30 = tpu.strided_load %arg9[%c1_35, %c1_36, %c0_37] {strides = array<i32: 2, 2, 1>} : memref<18x18x8xf32, #tpu.memory_space<vmem>>, vector<8x8x8xf32>
    %31 = vector.shape_cast %30 : vector<8x8x8xf32> to vector<64x8xf32>
    %c4 = arith.constant 4 : index
    %c0_38 = arith.constant 0 : index
    %c0_39 = arith.constant 0 : index
    %32 = vector.load %arg2[%c4, %c0_38, %c0_39] : memref<9x8x16xf32, #tpu.memory_space<vmem>>, vector<1x8x16xf32>
    %33 = vector.shape_cast %32 : vector<1x8x16xf32> to vector<8x16xf32>
    %cst_40 = arith.constant dense<0.000000e+00> : vector<64x16xf32>
    %34 = tpu.matmul %31, %33, %cst_40 {dimension_numbers = #tpu.dot_dimension_numbers<[1], [0], [0], [1], [0, 0, 1, 1], [], []>} : vector<64x8xf32>, vector<8x16xf32>, vector<64x16xf32> -> vector<64x16xf32>
    %35 = arith.addf %29, %34 : vector<64x16xf32>
    %c1_41 = arith.constant 1 : index
    %c2_42 = arith.constant 2 : index
    %c0_43 = arith.constant 0 : index
    %36 = tpu.strided_load %arg9[%c1_41, %c2_42, %c0_43] {strides = array<i32: 2, 2, 1>} : memref<18x18x8xf32, #tpu.memory_space<vmem>>, vector<8x8x8xf32>
    %37 = vector.shape_cast %36 : vector<8x8x8xf32> to vector<64x8xf32>
    %c5 = arith.constant 5 : index
    %c0_44 = arith.constant 0 : index
    %c0_45 = arith.constant 0 : index
    %38 = vector.load %arg2[%c5, %c0_44, %c0_45] : memref<9x8x16xf32, #tpu.memory_space<vmem>>, vector<1x8x16xf32>
    %39 = vector.shape_cast %38 : vector<1x8x16xf32> to vector<8x16xf32>
    %cst_46 = arith.constant dense<0.000000e+00> : vector<64x16xf32>
    %40 = tpu.matmul %37, %39, %cst_46 {dimension_numbers = #tpu.dot_dimension_numbers<[1], [0], [0], [1], [0, 0, 1, 1], [], []>} : vector<64x8xf32>, vector<8x16xf32>, vector<64x16xf32> -> vector<64x16xf32>
    %41 = arith.addf %35, %40 : vector<64x16xf32>
    %c2_47 = arith.constant 2 : index
    %c0_48 = arith.constant 0 : index
    %c0_49 = arith.constant 0 : index
    %42 = tpu.strided_load %arg9[%c2_47, %c0_48, %c0_49] {strides = array<i32: 2, 2, 1>} : memref<18x18x8xf32, #tpu.memory_space<vmem>>, vector<8x8x8xf32>
    %43 = vector.shape_cast %42 : vector<8x8x8xf32> to vector<64x8xf32>
    %c6 = arith.constant 6 : index
    %c0_50 = arith.constant 0 : index
    %c0_51 = arith.constant 0 : index
    %44 = vector.load %arg2[%c6, %c0_50, %c0_51] : memref<9x8x16xf32, #tpu.memory_space<vmem>>, vector<1x8x16xf32>
    %45 = vector.shape_cast %44 : vector<1x8x16xf32> to vector<8x16xf32>
    %cst_52 = arith.constant dense<0.000000e+00> : vector<64x16xf32>
    %46 = tpu.matmul %43, %45, %cst_52 {dimension_numbers = #tpu.dot_dimension_numbers<[1], [0], [0], [1], [0, 0, 1, 1], [], []>} : vector<64x8xf32>, vector<8x16xf32>, vector<64x16xf32> -> vector<64x16xf32>
    %47 = arith.addf %41, %46 : vector<64x16xf32>
    %c2_53 = arith.constant 2 : index
    %c1_54 = arith.constant 1 : index
    %c0_55 = arith.constant 0 : index
    %48 = tpu.strided_load %arg9[%c2_53, %c1_54, %c0_55] {strides = array<i32: 2, 2, 1>} : memref<18x18x8xf32, #tpu.memory_space<vmem>>, vector<8x8x8xf32>
    %49 = vector.shape_cast %48 : vector<8x8x8xf32> to vector<64x8xf32>
    %c7 = arith.constant 7 : index
    %c0_56 = arith.constant 0 : index
    %c0_57 = arith.constant 0 : index
    %50 = vector.load %arg2[%c7, %c0_56, %c0_57] : memref<9x8x16xf32, #tpu.memory_space<vmem>>, vector<1x8x16xf32>
    %51 = vector.shape_cast %50 : vector<1x8x16xf32> to vector<8x16xf32>
    %cst_58 = arith.constant dense<0.000000e+00> : vector<64x16xf32>
    %52 = tpu.matmul %49, %51, %cst_58 {dimension_numbers = #tpu.dot_dimension_numbers<[1], [0], [0], [1], [0, 0, 1, 1], [], []>} : vector<64x8xf32>, vector<8x16xf32>, vector<64x16xf32> -> vector<64x16xf32>
    %53 = arith.addf %47, %52 : vector<64x16xf32>
    %c2_59 = arith.constant 2 : index
    %c2_60 = arith.constant 2 : index
    %c0_61 = arith.constant 0 : index
    %54 = tpu.strided_load %arg9[%c2_59, %c2_60, %c0_61] {strides = array<i32: 2, 2, 1>} : memref<18x18x8xf32, #tpu.memory_space<vmem>>, vector<8x8x8xf32>
    %55 = vector.shape_cast %54 : vector<8x8x8xf32> to vector<64x8xf32>
    %c8 = arith.constant 8 : index
    %c0_62 = arith.constant 0 : index
    %c0_63 = arith.constant 0 : index
    %56 = vector.load %arg2[%c8, %c0_62, %c0_63] : memref<9x8x16xf32, #tpu.memory_space<vmem>>, vector<1x8x16xf32>
    %57 = vector.shape_cast %56 : vector<1x8x16xf32> to vector<8x16xf32>
    %cst_64 = arith.constant dense<0.000000e+00> : vector<64x16xf32>
    %58 = tpu.matmul %55, %57, %cst_64 {dimension_numbers = #tpu.dot_dimension_numbers<[1], [0], [0], [1], [0, 0, 1, 1], [], []>} : vector<64x8xf32>, vector<8x16xf32>, vector<64x16xf32> -> vector<64x16xf32>
    %59 = arith.addf %53, %58 : vector<64x16xf32>
    %c0_65 = arith.constant 0 : index
    %c0_66 = arith.constant 0 : index
    %60 = vector.load %arg3[%c0_65, %c0_66] : memref<1x16xf32, #tpu.memory_space<vmem>>, vector<1x16xf32>
    %61 = vector.broadcast %60 : vector<1x16xf32> to vector<64x16xf32>
    %62 = arith.addf %59, %61 : vector<64x16xf32>
    %cst_67 = arith.constant 0.000000e+00 : f32
    %63 = vector.broadcast %cst_67 : f32 to vector<64x16xf32>
    %64 = arith.maximumf %62, %63 : vector<64x16xf32>
    %cst_68 = arith.constant 0.000000e+00 : f32
    %65 = vector.broadcast %cst_68 : f32 to vector<10x10x16xf32>
    %c0_69 = arith.constant 0 : index
    %c0_70 = arith.constant 0 : index
    %c0_71 = arith.constant 0 : index
    %66 = vector.load %arg10[%c0_69, %c0_70, %c0_71] : memref<10x10x16xf32, #tpu.memory_space<vmem>>, vector<10x10x16xf32>
    tpu.vector_store %arg10[%c0_69, %c0_70, %c0_71], %65 {strides = array<i32>} : memref<10x10x16xf32, #tpu.memory_space<vmem>>, vector<10x10x16xf32>,
    %67 = vector.shape_cast %64 : vector<64x16xf32> to vector<8x8x16xf32>
    %c1_72 = arith.constant 1 : index
    %c1_73 = arith.constant 1 : index
    %c0_74 = arith.constant 0 : index
    %68 = vector.load %arg10[%c1_72, %c1_73, %c0_74] : memref<10x10x16xf32, #tpu.memory_space<vmem>>, vector<8x8x16xf32>
    tpu.vector_store %arg10[%c1_72, %c1_73, %c0_74], %67 {strides = array<i32>} : memref<10x10x16xf32, #tpu.memory_space<vmem>>, vector<8x8x16xf32>,
    %cst_75 = arith.constant 0.000000e+00 : f32
    %69 = vector.broadcast %cst_75 : f32 to vector<64x16xf32>
    %c0_76 = arith.constant 0 : index
    %c0_77 = arith.constant 0 : index
    %c0_78 = arith.constant 0 : index
    %70 = vector.load %arg10[%c0_76, %c0_77, %c0_78] : memref<10x10x16xf32, #tpu.memory_space<vmem>>, vector<8x8x16xf32>
    %71 = vector.shape_cast %70 : vector<8x8x16xf32> to vector<64x16xf32>
    %c0_79 = arith.constant 0 : index
    %c0_80 = arith.constant 0 : index
    %c0_81 = arith.constant 0 : index
    %72 = vector.load %arg4[%c0_79, %c0_80, %c0_81] : memref<9x16x16xf32, #tpu.memory_space<vmem>>, vector<1x16x16xf32>
    %73 = vector.shape_cast %72 : vector<1x16x16xf32> to vector<16x16xf32>
    %cst_82 = arith.constant dense<0.000000e+00> : vector<64x16xf32>
    %74 = tpu.matmul %71, %73, %cst_82 {dimension_numbers = #tpu.dot_dimension_numbers<[1], [0], [0], [1], [0, 0, 1, 1], [], []>} : vector<64x16xf32>, vector<16x16xf32>, vector<64x16xf32> -> vector<64x16xf32>
    %75 = arith.addf %69, %74 : vector<64x16xf32>
    %c0_83 = arith.constant 0 : index
    %c1_84 = arith.constant 1 : index
    %c0_85 = arith.constant 0 : index
    %76 = vector.load %arg10[%c0_83, %c1_84, %c0_85] : memref<10x10x16xf32, #tpu.memory_space<vmem>>, vector<8x8x16xf32>
    %77 = vector.shape_cast %76 : vector<8x8x16xf32> to vector<64x16xf32>
    %c1_86 = arith.constant 1 : index
    %c0_87 = arith.constant 0 : index
    %c0_88 = arith.constant 0 : index
    %78 = vector.load %arg4[%c1_86, %c0_87, %c0_88] : memref<9x16x16xf32, #tpu.memory_space<vmem>>, vector<1x16x16xf32>
    %79 = vector.shape_cast %78 : vector<1x16x16xf32> to vector<16x16xf32>
    %cst_89 = arith.constant dense<0.000000e+00> : vector<64x16xf32>
    %80 = tpu.matmul %77, %79, %cst_89 {dimension_numbers = #tpu.dot_dimension_numbers<[1], [0], [0], [1], [0, 0, 1, 1], [], []>} : vector<64x16xf32>, vector<16x16xf32>, vector<64x16xf32> -> vector<64x16xf32>
    %81 = arith.addf %75, %80 : vector<64x16xf32>
    %c0_90 = arith.constant 0 : index
    %c2_91 = arith.constant 2 : index
    %c0_92 = arith.constant 0 : index
    %82 = vector.load %arg10[%c0_90, %c2_91, %c0_92] : memref<10x10x16xf32, #tpu.memory_space<vmem>>, vector<8x8x16xf32>
    %83 = vector.shape_cast %82 : vector<8x8x16xf32> to vector<64x16xf32>
    %c2_93 = arith.constant 2 : index
    %c0_94 = arith.constant 0 : index
    %c0_95 = arith.constant 0 : index
    %84 = vector.load %arg4[%c2_93, %c0_94, %c0_95] : memref<9x16x16xf32, #tpu.memory_space<vmem>>, vector<1x16x16xf32>
    %85 = vector.shape_cast %84 : vector<1x16x16xf32> to vector<16x16xf32>
    %cst_96 = arith.constant dense<0.000000e+00> : vector<64x16xf32>
    %86 = tpu.matmul %83, %85, %cst_96 {dimension_numbers = #tpu.dot_dimension_numbers<[1], [0], [0], [1], [0, 0, 1, 1], [], []>} : vector<64x16xf32>, vector<16x16xf32>, vector<64x16xf32> -> vector<64x16xf32>
    %87 = arith.addf %81, %86 : vector<64x16xf32>
    %c1_97 = arith.constant 1 : index
    %c0_98 = arith.constant 0 : index
    %c0_99 = arith.constant 0 : index
    %88 = vector.load %arg10[%c1_97, %c0_98, %c0_99] : memref<10x10x16xf32, #tpu.memory_space<vmem>>, vector<8x8x16xf32>
    %89 = vector.shape_cast %88 : vector<8x8x16xf32> to vector<64x16xf32>
    %c3_100 = arith.constant 3 : index
    %c0_101 = arith.constant 0 : index
    %c0_102 = arith.constant 0 : index
    %90 = vector.load %arg4[%c3_100, %c0_101, %c0_102] : memref<9x16x16xf32, #tpu.memory_space<vmem>>, vector<1x16x16xf32>
    %91 = vector.shape_cast %90 : vector<1x16x16xf32> to vector<16x16xf32>
    %cst_103 = arith.constant dense<0.000000e+00> : vector<64x16xf32>
    %92 = tpu.matmul %89, %91, %cst_103 {dimension_numbers = #tpu.dot_dimension_numbers<[1], [0], [0], [1], [0, 0, 1, 1], [], []>} : vector<64x16xf32>, vector<16x16xf32>, vector<64x16xf32> -> vector<64x16xf32>
    %93 = arith.addf %87, %92 : vector<64x16xf32>
    %c1_104 = arith.constant 1 : index
    %c1_105 = arith.constant 1 : index
    %c0_106 = arith.constant 0 : index
    %94 = vector.load %arg10[%c1_104, %c1_105, %c0_106] : memref<10x10x16xf32, #tpu.memory_space<vmem>>, vector<8x8x16xf32>
    %95 = vector.shape_cast %94 : vector<8x8x16xf32> to vector<64x16xf32>
    %c4_107 = arith.constant 4 : index
    %c0_108 = arith.constant 0 : index
    %c0_109 = arith.constant 0 : index
    %96 = vector.load %arg4[%c4_107, %c0_108, %c0_109] : memref<9x16x16xf32, #tpu.memory_space<vmem>>, vector<1x16x16xf32>
    %97 = vector.shape_cast %96 : vector<1x16x16xf32> to vector<16x16xf32>
    %cst_110 = arith.constant dense<0.000000e+00> : vector<64x16xf32>
    %98 = tpu.matmul %95, %97, %cst_110 {dimension_numbers = #tpu.dot_dimension_numbers<[1], [0], [0], [1], [0, 0, 1, 1], [], []>} : vector<64x16xf32>, vector<16x16xf32>, vector<64x16xf32> -> vector<64x16xf32>
    %99 = arith.addf %93, %98 : vector<64x16xf32>
    %c1_111 = arith.constant 1 : index
    %c2_112 = arith.constant 2 : index
    %c0_113 = arith.constant 0 : index
    %100 = vector.load %arg10[%c1_111, %c2_112, %c0_113] : memref<10x10x16xf32, #tpu.memory_space<vmem>>, vector<8x8x16xf32>
    %101 = vector.shape_cast %100 : vector<8x8x16xf32> to vector<64x16xf32>
    %c5_114 = arith.constant 5 : index
    %c0_115 = arith.constant 0 : index
    %c0_116 = arith.constant 0 : index
    %102 = vector.load %arg4[%c5_114, %c0_115, %c0_116] : memref<9x16x16xf32, #tpu.memory_space<vmem>>, vector<1x16x16xf32>
    %103 = vector.shape_cast %102 : vector<1x16x16xf32> to vector<16x16xf32>
    %cst_117 = arith.constant dense<0.000000e+00> : vector<64x16xf32>
    %104 = tpu.matmul %101, %103, %cst_117 {dimension_numbers = #tpu.dot_dimension_numbers<[1], [0], [0], [1], [0, 0, 1, 1], [], []>} : vector<64x16xf32>, vector<16x16xf32>, vector<64x16xf32> -> vector<64x16xf32>
    %105 = arith.addf %99, %104 : vector<64x16xf32>
    %c2_118 = arith.constant 2 : index
    %c0_119 = arith.constant 0 : index
    %c0_120 = arith.constant 0 : index
    %106 = vector.load %arg10[%c2_118, %c0_119, %c0_120] : memref<10x10x16xf32, #tpu.memory_space<vmem>>, vector<8x8x16xf32>
    %107 = vector.shape_cast %106 : vector<8x8x16xf32> to vector<64x16xf32>
    %c6_121 = arith.constant 6 : index
    %c0_122 = arith.constant 0 : index
    %c0_123 = arith.constant 0 : index
    %108 = vector.load %arg4[%c6_121, %c0_122, %c0_123] : memref<9x16x16xf32, #tpu.memory_space<vmem>>, vector<1x16x16xf32>
    %109 = vector.shape_cast %108 : vector<1x16x16xf32> to vector<16x16xf32>
    %cst_124 = arith.constant dense<0.000000e+00> : vector<64x16xf32>
    %110 = tpu.matmul %107, %109, %cst_124 {dimension_numbers = #tpu.dot_dimension_numbers<[1], [0], [0], [1], [0, 0, 1, 1], [], []>} : vector<64x16xf32>, vector<16x16xf32>, vector<64x16xf32> -> vector<64x16xf32>
    %111 = arith.addf %105, %110 : vector<64x16xf32>
    %c2_125 = arith.constant 2 : index
    %c1_126 = arith.constant 1 : index
    %c0_127 = arith.constant 0 : index
    %112 = vector.load %arg10[%c2_125, %c1_126, %c0_127] : memref<10x10x16xf32, #tpu.memory_space<vmem>>, vector<8x8x16xf32>
    %113 = vector.shape_cast %112 : vector<8x8x16xf32> to vector<64x16xf32>
    %c7_128 = arith.constant 7 : index
    %c0_129 = arith.constant 0 : index
    %c0_130 = arith.constant 0 : index
    %114 = vector.load %arg4[%c7_128, %c0_129, %c0_130] : memref<9x16x16xf32, #tpu.memory_space<vmem>>, vector<1x16x16xf32>
    %115 = vector.shape_cast %114 : vector<1x16x16xf32> to vector<16x16xf32>
    %cst_131 = arith.constant dense<0.000000e+00> : vector<64x16xf32>
    %116 = tpu.matmul %113, %115, %cst_131 {dimension_numbers = #tpu.dot_dimension_numbers<[1], [0], [0], [1], [0, 0, 1, 1], [], []>} : vector<64x16xf32>, vector<16x16xf32>, vector<64x16xf32> -> vector<64x16xf32>
    %117 = arith.addf %111, %116 : vector<64x16xf32>
    %c2_132 = arith.constant 2 : index
    %c2_133 = arith.constant 2 : index
    %c0_134 = arith.constant 0 : index
    %118 = vector.load %arg10[%c2_132, %c2_133, %c0_134] : memref<10x10x16xf32, #tpu.memory_space<vmem>>, vector<8x8x16xf32>
    %119 = vector.shape_cast %118 : vector<8x8x16xf32> to vector<64x16xf32>
    %c8_135 = arith.constant 8 : index
    %c0_136 = arith.constant 0 : index
    %c0_137 = arith.constant 0 : index
    %120 = vector.load %arg4[%c8_135, %c0_136, %c0_137] : memref<9x16x16xf32, #tpu.memory_space<vmem>>, vector<1x16x16xf32>
    %121 = vector.shape_cast %120 : vector<1x16x16xf32> to vector<16x16xf32>
    %cst_138 = arith.constant dense<0.000000e+00> : vector<64x16xf32>
    %122 = tpu.matmul %119, %121, %cst_138 {dimension_numbers = #tpu.dot_dimension_numbers<[1], [0], [0], [1], [0, 0, 1, 1], [], []>} : vector<64x16xf32>, vector<16x16xf32>, vector<64x16xf32> -> vector<64x16xf32>
    %123 = arith.addf %117, %122 : vector<64x16xf32>
    %c0_139 = arith.constant 0 : index
    %c0_140 = arith.constant 0 : index
    %124 = vector.load %arg5[%c0_139, %c0_140] : memref<1x16xf32, #tpu.memory_space<vmem>>, vector<1x16xf32>
    %125 = vector.broadcast %124 : vector<1x16xf32> to vector<64x16xf32>
    %126 = arith.addf %123, %125 : vector<64x16xf32>
    %c1_141 = arith.constant 1 : index
    %c1_142 = arith.constant 1 : index
    %c0_143 = arith.constant 0 : index
    %127 = tpu.strided_load %arg9[%c1_141, %c1_142, %c0_143] {strides = array<i32: 2, 2, 1>} : memref<18x18x8xf32, #tpu.memory_space<vmem>>, vector<8x8x8xf32>
    %128 = vector.shape_cast %127 : vector<8x8x8xf32> to vector<64x8xf32>
    %c0_144 = arith.constant 0 : index
    %c0_145 = arith.constant 0 : index
    %129 = vector.load %arg6[%c0_144, %c0_145] : memref<8x16xf32, #tpu.memory_space<vmem>>, vector<8x16xf32>
    %cst_146 = arith.constant dense<0.000000e+00> : vector<64x16xf32>
    %130 = tpu.matmul %128, %129, %cst_146 {dimension_numbers = #tpu.dot_dimension_numbers<[1], [0], [0], [1], [0, 0, 1, 1], [], []>} : vector<64x8xf32>, vector<8x16xf32>, vector<64x16xf32> -> vector<64x16xf32>
    %c0_147 = arith.constant 0 : index
    %c0_148 = arith.constant 0 : index
    %131 = vector.load %arg7[%c0_147, %c0_148] : memref<1x16xf32, #tpu.memory_space<vmem>>, vector<1x16xf32>
    %132 = vector.broadcast %131 : vector<1x16xf32> to vector<64x16xf32>
    %133 = arith.addf %130, %132 : vector<64x16xf32>
    %134 = arith.addf %126, %133 : vector<64x16xf32>
    %cst_149 = arith.constant 0.000000e+00 : f32
    %135 = vector.broadcast %cst_149 : f32 to vector<64x16xf32>
    %136 = arith.maximumf %134, %135 : vector<64x16xf32>
    %137 = vector.shape_cast %136 : vector<64x16xf32> to vector<8x8x16xf32>
    %c0_150 = arith.constant 0 : index
    %c0_151 = arith.constant 0 : index
    %c0_152 = arith.constant 0 : index
    %c0_153 = arith.constant 0 : index
    %138 = vector.load %arg8[%c0_150, %c0_151, %c0_152, %c0_153] : memref<1x8x8x16xf32, #tpu.memory_space<vmem>>, vector<1x8x8x16xf32>
    %139 = vector.shape_cast %138 : vector<1x8x8x16xf32> to vector<8x8x16xf32>
    %140 = vector.shape_cast %137 : vector<8x8x16xf32> to vector<1x8x8x16xf32>
    tpu.vector_store %arg8[%c0_150, %c0_151, %c0_152, %c0_153], %140 {strides = array<i32>} : memref<1x8x8x16xf32, #tpu.memory_space<vmem>>, vector<1x8x8x16xf32>,
    return
  }
  func.func @transform_0(%arg0: i32) -> (i32, i32, i32, i32) {
    %c0_i32 = arith.constant 0 : i32
    %c0_i32_0 = arith.constant 0 : i32
    %c0_i32_1 = arith.constant 0 : i32
    %c0_i32_2 = arith.constant 0 : i32
    return %arg0, %c0_i32, %c0_i32_0, %c0_i32_1 : i32, i32, i32, i32
  }
  func.func @transform_1(%arg0: i32) -> (i32, i32, i32) {
    %c0_i32 = arith.constant 0 : i32
    %c0_i32_0 = arith.constant 0 : i32
    %c0_i32_1 = arith.constant 0 : i32
    %c0_i32_2 = arith.constant 0 : i32
    return %c0_i32, %c0_i32_0, %c0_i32_1 : i32, i32, i32
  }
  func.func @transform_2(%arg0: i32) -> (i32, i32) {
    %c0_i32 = arith.constant 0 : i32
    %c0_i32_0 = arith.constant 0 : i32
    %c0_i32_1 = arith.constant 0 : i32
    return %c0_i32, %c0_i32_0 : i32, i32
  }
  func.func @transform_3(%arg0: i32) -> (i32, i32, i32) {
    %c0_i32 = arith.constant 0 : i32
    %c0_i32_0 = arith.constant 0 : i32
    %c0_i32_1 = arith.constant 0 : i32
    %c0_i32_2 = arith.constant 0 : i32
    return %c0_i32, %c0_i32_0, %c0_i32_1 : i32, i32, i32
  }
  func.func @transform_4(%arg0: i32) -> (i32, i32) {
    %c0_i32 = arith.constant 0 : i32
    %c0_i32_0 = arith.constant 0 : i32
    %c0_i32_1 = arith.constant 0 : i32
    return %c0_i32, %c0_i32_0 : i32, i32
  }
  func.func @transform_5(%arg0: i32) -> (i32, i32) {
    %c0_i32 = arith.constant 0 : i32
    %c0_i32_0 = arith.constant 0 : i32
    %c0_i32_1 = arith.constant 0 : i32
    return %c0_i32, %c0_i32_0 : i32, i32
  }
  func.func @transform_6(%arg0: i32) -> (i32, i32) {
    %c0_i32 = arith.constant 0 : i32
    %c0_i32_0 = arith.constant 0 : i32
    %c0_i32_1 = arith.constant 0 : i32
    return %c0_i32, %c0_i32_0 : i32, i32
  }
  func.func @transform_7(%arg0: i32) -> (i32, i32, i32, i32) {
    %c0_i32 = arith.constant 0 : i32
    %c0_i32_0 = arith.constant 0 : i32
    %c0_i32_1 = arith.constant 0 : i32
    %c0_i32_2 = arith.constant 0 : i32
    return %arg0, %c0_i32, %c0_i32_0, %c0_i32_1 : i32, i32, i32, i32
  }
}

</mosaic_0001>

<llo_original>
// kernel: basic_block_forward.1
$region0: #{basic_block_forward.1}
  #allocation0 [shape = 'u32[]', space=smem, size = 0x4, offset = 0x4, fixed_abs, tag = 'smem constant byte address 0x4 - core index']
  #allocation1 [shape = 'u32[72,128]{1,0:T(1,128)}', space=vmem, size = 0x9000, scoped, tag = 'internal scratch']
  #allocation2 [shape = 'f32[18,18,8]{2,1,0:T(8,128)}', space=vmem, size = 0x36000, scoped, tag = 'scratch operand']
  #allocation3 [shape = 'f32[10,10,16]{2,1,0:T(8,128)}', space=vmem, size = 0x14000, scoped, tag = 'scratch operand']
  %s0 = inlined_call_operand.vmem [shape: f32[2,16,16,8], index: 0, kind: input, shape index: {}]
  %s1 = inlined_call_operand.vmem [shape: f32[9,8,16], index: 1, kind: input, shape index: {}]
  %s2 = inlined_call_operand.vmem [shape: f32[1,16], index: 2, kind: input, shape index: {}]
  %s3 = inlined_call_operand.vmem [shape: f32[9,16,16], index: 3, kind: input, shape index: {}]
  %s4 = inlined_call_operand.vmem [shape: f32[1,16], index: 4, kind: input, shape index: {}]
  %s5 = inlined_call_operand.vmem [shape: f32[8,16], index: 5, kind: input, shape index: {}]
  %s6 = inlined_call_operand.vmem [shape: f32[1,16], index: 6, kind: input, shape index: {}]
  %s7 = inlined_call_operand.hbm [shape: f32[2,8,8,16], index: 7, kind: output, shape index: {}]
  %s8 = sld [smem:[#allocation0]]
  $region61: #{basic_block_forward.1} parent=0
    _
  %s10 = ssub.s32 1, %s8
  %s11 = scalar_select 0, %s10, %s8
  $region1: #{basic_block_forward.1} parent=0
    #allocation4 [shape = 'u8[65536]{0}', space=vmem, size = 0x10000, scoped, tag = 'output window, operand 0']
    #allocation5 [shape = 's32[2]{0}', space=sflag, size = 0x8, scoped, tag = 'scoped memory for basic_block_forward.1']
    %12 = vsyncpa [#allocation5], 0
    %s13 = scalar_lea.sflag [#allocation5], 1
    %14 = vsyncpa %s13, 0
    loop: start=0, step=1, limit=4
    $region2: #{basic_block_forward.1} parent=1 // loop_pre_header
      _
    $region3: #{basic_block_forward.1} parent=1 // loop_header
      %s16 = sphi 0, %s20
      %p17 = scmp.ge.s32.totalorder %s16, 4
      %s26 = sphi 0, %s28
      %s29 = sphi 0, %s26
      %s30 = sphi 0, %s29
      %s46 = sphi 0, %s30
      %s50 = sphi 0, %s50
      %s52 = sphi 0, %s50
      %s53 = sphi 0, %s52
      %s67 = sphi 0, %s53
      %s71 = sphi 0, %s71
      %s73 = sphi 0, %s71
      %s74 = sphi 0, %s73
      %s88 = sphi 0, %s74
      %s92 = sphi 0, %s92
      %s94 = sphi 0, %s92
      %s95 = sphi 0, %s94
      %s109 = sphi 0, %s95
      %s113 = sphi 0, %s113
      %s115 = sphi 0, %s113
      %s116 = sphi 0, %s115
      %s130 = sphi 0, %s116
      %s134 = sphi 0, %s134
      %s136 = sphi 0, %s134
      %s137 = sphi 0, %s136
      %s151 = sphi 0, %s137
      %s155 = sphi 0, %s155
      %s157 = sphi 0, %s155
      %s158 = sphi 0, %s157
      %s172 = sphi 0, %s158
      %s178 = sphi 0, %s180
      %s181 = sphi 0, %s178
      %s182 = sphi 0, %s181
      %s198 = sphi 0, %s182
    $region4: #{basic_block_forward.1} parent=1 // loop_header_branch
      %19 = sbr.rel (%p17) target = $region8
    $region5: #{basic_block_forward.1} parent=1 // loop_body
      %s21 = ssub.s32 %s16, 1
      %s22 = ssub.s32 %s16, 2
      %s23 = sadd.s32 %s16, 1
      %s24 = ssub.s32 %s16, %s23
      %p25 = scmp.eq.s32.totalorder %s24, 0
      %s27 = sadd.s32 %s26, 1
      %s28 = scalar_select %p25, %s26, %s27
      %p31 = pneg %p25
      %p32 = scmp.eq.s32.totalorder %s16, 1
      %p33 = por %p31, %p32
      %p34 = scmp.ne.s32.totalorder %s26, %s29
      %p35 = scmp.eq.s32.totalorder %s16, 0
      %p36 = por %p34, %p35
      %p37 = scmp.ne.s32.totalorder %s26, %s29
      %p38 = scmp.eq.s32.totalorder %s21, 1
      %p39 = por %p37, %p38
      %p40 = scmp.ne.s32.totalorder %s29, %s30
      %p41 = scmp.eq.s32.totalorder %s21, 0
      %p42 = por %p40, %p41
      %p43 = scmp.ne.s32.totalorder %s29, %s30
      %p44 = scmp.eq.s32.totalorder %s22, 1
      %p45 = por %p43, %p44
      %p47 = scmp.ne.s32.totalorder %s30, %s46
      %p48 = scmp.eq.s32.totalorder %s22, 0
      %p49 = por %p47, %p48
      %s51 = sadd.s32 %s50, 1
      %p54 = scmp.eq.s32.totalorder %s16, 1
      %p55 = scmp.ne.s32.totalorder %s50, %s52
      %p56 = scmp.eq.s32.totalorder %s16, 0
      %p57 = por %p55, %p56
      %p58 = scmp.ne.s32.totalorder %s50, %s52
      %p59 = scmp.eq.s32.totalorder %s21, 1
      %p60 = por %p58, %p59
      %p61 = scmp.ne.s32.totalorder %s52, %s53
      %p62 = scmp.eq.s32.totalorder %s21, 0
      %p63 = por %p61, %p62
      %p64 = scmp.ne.s32.totalorder %s52, %s53
      %p65 = scmp.eq.s32.totalorder %s22, 1
      %p66 = por %p64, %p65
      %p68 = scmp.ne.s32.totalorder %s53, %s67
      %p69 = scmp.eq.s32.totalorder %s22, 0
      %p70 = por %p68, %p69
      %s72 = sadd.s32 %s71, 1
      %p75 = scmp.eq.s32.totalorder %s16, 1
      %p76 = scmp.ne.s32.totalorder %s71, %s73
      %p77 = scmp.eq.s32.totalorder %s16, 0
      %p78 = por %p76, %p77
      %p79 = scmp.ne.s32.totalorder %s71, %s73
      %p80 = scmp.eq.s32.totalorder %s21, 1
      %p81 = por %p79, %p80
      %p82 = scmp.ne.s32.totalorder %s73, %s74
      %p83 = scmp.eq.s32.totalorder %s21, 0
      %p84 = por %p82, %p83
      %p85 = scmp.ne.s32.totalorder %s73, %s74
      %p86 = scmp.eq.s32.totalorder %s22, 1
      %p87 = por %p85, %p86
      %p89 = scmp.ne.s32.totalorder %s74, %s88
      %p90 = scmp.eq.s32.totalorder %s22, 0
      %p91 = por %p89, %p90
      %s93 = sadd.s32 %s92, 1
      %p96 = scmp.eq.s32.totalorder %s16, 1
      %p97 = scmp.ne.s32.totalorder %s92, %s94
      %p98 = scmp.eq.s32.totalorder %s16, 0
      %p99 = por %p97, %p98
      %p100 = scmp.ne.s32.totalorder %s92, %s94
      %p101 = scmp.eq.s32.totalorder %s21, 1
      %p102 = por %p100, %p101
      %p103 = scmp.ne.s32.totalorder %s94, %s95
      %p104 = scmp.eq.s32.totalorder %s21, 0
      %p105 = por %p103, %p104
      %p106 = scmp.ne.s32.totalorder %s94, %s95
      %p107 = scmp.eq.s32.totalorder %s22, 1
      %p108 = por %p106, %p107
      %p110 = scmp.ne.s32.totalorder %s95, %s109
      %p111 = scmp.eq.s32.totalorder %s22, 0
      %p112 = por %p110, %p111
      %s114 = sadd.s32 %s113, 1
      %p117 = scmp.eq.s32.totalorder %s16, 1
      %p118 = scmp.ne.s32.totalorder %s113, %s115
      %p119 = scmp.eq.s32.totalorder %s16, 0
      %p120 = por %p118, %p119
      %p121 = scmp.ne.s32.totalorder %s113, %s115
      %p122 = scmp.eq.s32.totalorder %s21, 1
      %p123 = por %p121, %p122
      %p124 = scmp.ne.s32.totalorder %s115, %s116
      %p125 = scmp.eq.s32.totalorder %s21, 0
      %p126 = por %p124, %p125
      %p127 = scmp.ne.s32.totalorder %s115, %s116
      %p128 = scmp.eq.s32.totalorder %s22, 1
      %p129 = por %p127, %p128
      %p131 = scmp.ne.s32.totalorder %s116, %s130
      %p132 = scmp.eq.s32.totalorder %s22, 0
      %p133 = por %p131, %p132
      %s135 = sadd.s32 %s134, 1
      %p138 = scmp.eq.s32.totalorder %s16, 1
      %p139 = scmp.ne.s32.totalorder %s134, %s136
      %p140 = scmp.eq.s32.totalorder %s16, 0
      %p141 = por %p139, %p140
      %p142 = scmp.ne.s32.totalorder %s134, %s136
      %p143 = scmp.eq.s32.totalorder %s21, 1
      %p144 = por %p142, %p143
      %p145 = scmp.ne.s32.totalorder %s136, %s137
      %p146 = scmp.eq.s32.totalorder %s21, 0
      %p147 = por %p145, %p146
      %p148 = scmp.ne.s32.totalorder %s136, %s137
      %p149 = scmp.eq.s32.totalorder %s22, 1
      %p150 = por %p148, %p149
      %p152 = scmp.ne.s32.totalorder %s137, %s151
      %p153 = scmp.eq.s32.totalorder %s22, 0
      %p154 = por %p152, %p153
      %s156 = sadd.s32 %s155, 1
      %p159 = scmp.eq.s32.totalorder %s16, 1
      %p160 = scmp.ne.s32.totalorder %s155, %s157
      %p161 = scmp.eq.s32.totalorder %s16, 0
      %p162 = por %p160, %p161
      %p163 = scmp.ne.s32.totalorder %s155, %s157
      %p164 = scmp.eq.s32.totalorder %s21, 1
      %p165 = por %p163, %p164
      %p166 = scmp.ne.s32.totalorder %s157, %s158
      %p167 = scmp.eq.s32.totalorder %s21, 0
      %p168 = por %p166, %p167
      %p169 = scmp.ne.s32.totalorder %s157, %s158
      %p170 = scmp.eq.s32.totalorder %s22, 1
      %p171 = por %p169, %p170
      %p173 = scmp.ne.s32.totalorder %s158, %s172
      %p174 = scmp.eq.s32.totalorder %s22, 0
      %p175 = por %p173, %p174
      %s176 = ssub.s32 %s16, %s23
      %p177 = scmp.eq.s32.totalorder %s176, 0
      %s179 = sadd.s32 %s178, 1
      %s180 = scalar_select %p177, %s178, %s179
      %p183 = pneg %p177
      %p184 = scmp.eq.s32.totalorder %s16, 1
      %p185 = por %p183, %p184
      %p186 = scmp.ne.s32.totalorder %s178, %s181
      %p187 = scmp.eq.s32.totalorder %s16, 0
      %p188 = por %p186, %p187
      %p189 = scmp.ne.s32.totalorder %s178, %s181
      %p190 = scmp.eq.s32.totalorder %s21, 1
      %p191 = por %p189, %p190
      %p192 = scmp.ne.s32.totalorder %s181, %s182
      %p193 = scmp.eq.s32.totalorder %s21, 0
      %p194 = por %p192, %p193
      %p195 = scmp.ne.s32.totalorder %s181, %s182
      %p196 = scmp.eq.s32.totalorder %s22, 1
      %p197 = por %p195, %p196
      %p199 = scmp.ne.s32.totalorder %s182, %s198
      %p200 = scmp.eq.s32.totalorder %s22, 0
      %p201 = por %p199, %p200
      %p202 = scmp.le.s32.totalorder 1, %s16
      %p203 = scmp.lt.s32.totalorder %s16, 3
      %p204 = pnand %p202, %p203
      %p205 = pneg %p204
      // Predicated region
      $region9: #{basic_block_forward.1} parent=5 // pred_check
        _
      $region10: #{basic_block_forward.1} parent=5 // pred_check_branch
        %207 = sbr.rel (%p204) target = $region12
      $region11: #{basic_block_forward.1} parent=5 // pred_region
        %s208 = ssub.s32 %s16, 1
        // Predicated region
        $region13: #{basic_block_forward.1} parent=11 // pred_check
          %p209 = pneg %p63
        $region14: #{basic_block_forward.1} parent=11 // pred_check_branch
          %211 = sbr.rel (%p209) target = $region16
        $region15: #{basic_block_forward.1} parent=11 // pred_region
          _
        $region16: #{basic_block_forward.1} parent=11 // pred_fallthru
          _
        // Predicated region
        $region17: #{basic_block_forward.1} parent=11 // pred_check
          %p212 = pneg %p84
        $region18: #{basic_block_forward.1} parent=11 // pred_check_branch
          %214 = sbr.rel (%p212) target = $region20
        $region19: #{basic_block_forward.1} parent=11 // pred_region
          _
        $region20: #{basic_block_forward.1} parent=11 // pred_fallthru
          _
        // Predicated region
        $region21: #{basic_block_forward.1} parent=11 // pred_check
          %p215 = pneg %p105
        $region22: #{basic_block_forward.1} parent=11 // pred_check_branch
          %217 = sbr.rel (%p215) target = $region24
        $region23: #{basic_block_forward.1} parent=11 // pred_region
          _
        $region24: #{basic_block_forward.1} parent=11 // pred_fallthru
          _
        // Predicated region
        $region25: #{basic_block_forward.1} parent=11 // pred_check
          %p218 = pneg %p126
        $region26: #{basic_block_forward.1} parent=11 // pred_check_branch
          %220 = sbr.rel (%p218) target = $region28
        $region27: #{basic_block_forward.1} parent=11 // pred_region
          _
        $region28: #{basic_block_forward.1} parent=11 // pred_fallthru
          _
        // Predicated region
        $region29: #{basic_block_forward.1} parent=11 // pred_check
          %p221 = pneg %p147
        $region30: #{basic_block_forward.1} parent=11 // pred_check_branch
          %223 = sbr.rel (%p221) target = $region32
        $region31: #{basic_block_forward.1} parent=11 // pred_region
          _
        $region32: #{basic_block_forward.1} parent=11 // pred_fallthru
          _
        // Predicated region
        $region33: #{basic_block_forward.1} parent=11 // pred_check
          %p224 = pneg %p168
        $region34: #{basic_block_forward.1} parent=11 // pred_check_branch
          %226 = sbr.rel (%p224) target = $region36
        $region35: #{basic_block_forward.1} parent=11 // pred_region
          _
        $region36: #{basic_block_forward.1} parent=11 // pred_fallthru
          _
      $region12: #{basic_block_forward.1} parent=5 // pred_fallthru
        _
      %p227 = scmp.lt.s32.totalorder %s16, 2
      // Predicated region
      $region37: #{basic_block_forward.1} parent=5 // pred_check
        %p228 = pneg %p227
      $region38: #{basic_block_forward.1} parent=5 // pred_check_branch
        %230 = sbr.rel (%p228) target = $region40
      $region39: #{basic_block_forward.1} parent=5 // pred_region
        // Predicated region
        $region41: #{basic_block_forward.1} parent=39 // pred_check
          %p231 = pneg %p36
        $region42: #{basic_block_forward.1} parent=39 // pred_check_branch
          %233 = sbr.rel (%p231) target = $region44
        $region43: #{basic_block_forward.1} parent=39 // pred_region
          %p234 = scmp.lt.s32.totalorder %s16, 1
          %s235 = scalar_select %p234, %s16, 1
          %s236 = smul.addr %s235, 32
          %s237 = smul.addr %s236, 8
          %s238 = scalar_lea.vmem %s0, %s237
        $region44: #{basic_block_forward.1} parent=39 // pred_fallthru
          _
      $region40: #{basic_block_forward.1} parent=5 // pred_fallthru
        _
      %p239 = scmp.le.s32.totalorder 1, %s16
      %p240 = scmp.lt.s32.totalorder %s16, 3
      %p241 = pnand %p239, %p240
      %p242 = pneg %p241
      // Predicated region
      $region45: #{basic_block_forward.1} parent=5 // pred_check
        _
      $region46: #{basic_block_forward.1} parent=5 // pred_check_branch
        %244 = sbr.rel (%p241) target = $region48
      $region47: #{basic_block_forward.1} parent=5 // pred_region
        %s245 = ssub.s32 %s16, 1
        %p246 = scmp.lt.s32.totalorder %s21, 1
        %s247 = scalar_select %p246, %s21, 1
        %s248 = smul.addr %s247, 32
        %s249 = smul.addr %s248, 8
        %s250 = scalar_lea.vmem %s0, %s249
        %p251 = pneg %p42
        %p252 = pneg %p39
        %p253 = pneg %p63
        %p254 = pneg %p60
        %p255 = pneg %p84
        %p256 = pneg %p81
        %p257 = pneg %p105
        %p258 = pneg %p102
        %p259 = pneg %p126
        %p260 = pneg %p123
        %p261 = pneg %p147
        %p262 = pneg %p144
        %p263 = pneg %p168
        %p264 = pneg %p165
        %p265 = pneg %p194
        %p266 = pneg %p191
        %s267 = sand.u32 %s181, 1
        %s268 = scalar_lea.sflag [#allocation5], %s267
        %s269 = sand.u32 %s181, 1
        %s270 = smul.addr %s269, 64
        %s271 = scalar_lea.vmem [#allocation4], %s270
        %p272 = scmp.lt.s32.totalorder %s21, 1
        %s273 = scalar_select %p272, %s21, 1
        %s274 = smul.addr %s273, 32
        %s275 = smul.addr %s274, 8
        %s276 = scalar_lea.vmem %s0, %s275
        %vm277 = vcmask 64512
        %278 = vst.msk [vmem:[#allocation2] sm:$0xff] %vm277, 0.0
        %279 = vst.msk [vmem:[#allocation2 + $0x8] sm:$0xff] %vm277, 0.0
        %vm280 = vcmask 58368
        %281 = vst.msk [vmem:[#allocation2 + $0x10] sm:$0x3] %vm280, 0.0
        %282 = vst.msk [vmem:[#allocation2 + $0x18] sm:$0xff] %vm277, 0.0
        %283 = vst.msk [vmem:[#allocation2 + $0x20] sm:$0xff] %vm277, 0.0
        %284 = vst.msk [vmem:[#allocation2 + $0x28] sm:$0x3] %vm280, 0.0
        %285 = vst.msk [vmem:[#allocation2 + $0x30] sm:$0xff] %vm277, 0.0
        %286 = vst.msk [vmem:[#allocation2 + $0x38] sm:$0xff] %vm277, 0.0
        %287 = vst.msk [vmem:[#allocation2 + $0x40] sm:$0x3] %vm280, 0.0
        %288 = vst.msk [vmem:[#allocation2 + $0x48] sm:$0xff] %vm277, 0.0
        %289 = vst.msk [vmem:[#allocation2 + $0x50] sm:$0xff] %vm277, 0.0
        %290 = vst.msk [vmem:[#allocation2 + $0x58] sm:$0x3] %vm280, 0.0
        %291 = vst.msk [vmem:[#allocation2 + $0x60] sm:$0xff] %vm277, 0.0
        %292 = vst.msk [vmem:[#allocation2 + $0x68] sm:$0xff] %vm277, 0.0
        %293 = vst.msk [vmem:[#allocation2 + $0x70] sm:$0x3] %vm280, 0.0
        %294 = vst.msk [vmem:[#allocation2 + $0x78] sm:$0xff] %vm277, 0.0
        %295 = vst.msk [vmem:[#allocation2 + $0x80] sm:$0xff] %vm277, 0.0
        %296 = vst.msk [vmem:[#allocation2 + $0x88] sm:$0x3] %vm280, 0.0
        %297 = vst.msk [vmem:[#allocation2 + $0x90] sm:$0xff] %vm277, 0.0
        %298 = vst.msk [vmem:[#allocation2 + $0x98] sm:$0xff] %vm277, 0.0
        %299 = vst.msk [vmem:[#allocation2 + $0xa0] sm:$0x3] %vm280, 0.0
        %300 = vst.msk [vmem:[#allocation2 + $0xa8] sm:$0xff] %vm277, 0.0
        %301 = vst.msk [vmem:[#allocation2 + $0xb0] sm:$0xff] %vm277, 0.0
        %302 = vst.msk [vmem:[#allocation2 + $0xb8] sm:$0x3] %vm280, 0.0
        %303 = vst.msk [vmem:[#allocation2 + $0xc0] sm:$0xff] %vm277, 0.0
        %304 = vst.msk [vmem:[#allocation2 + $0xc8] sm:$0xff] %vm277, 0.0
        %305 = vst.msk [vmem:[#allocation2 + $0xd0] sm:$0x3] %vm280, 0.0
        %306 = vst.msk [vmem:[#allocation2 + $0xd8] sm:$0xff] %vm277, 0.0
        %307 = vst.msk [vmem:[#allocation2 + $0xe0] sm:$0xff] %vm277, 0.0
        %308 = vst.msk [vmem:[#allocation2 + $0xe8] sm:$0x3] %vm280, 0.0
        %309 = vst.msk [vmem:[#allocation2 + $0xf0] sm:$0xff] %vm277, 0.0
        %310 = vst.msk [vmem:[#allocation2 + $0xf8] sm:$0xff] %vm277, 0.0
        %311 = vst.msk [vmem:[#allocation2 + $0x100] sm:$0x3] %vm280, 0.0
        %312 = vst.msk [vmem:[#allocation2 + $0x108] sm:$0xff] %vm277, 0.0
        %313 = vst.msk [vmem:[#allocation2 + $0x110] sm:$0xff] %vm277, 0.0
        %314 = vst.msk [vmem:[#allocation2 + $0x118] sm:$0x3] %vm280, 0.0
        %315 = vst.msk [vmem:[#allocation2 + $0x120] sm:$0xff] %vm277, 0.0
        %316 = vst.msk [vmem:[#allocation2 + $0x128] sm:$0xff] %vm277, 0.0
        %317 = vst.msk [vmem:[#allocation2 + $0x130] sm:$0x3] %vm280, 0.0
        %318 = vst.msk [vmem:[#allocation2 + $0x138] sm:$0xff] %vm277, 0.0
        %319 = vst.msk [vmem:[#allocation2 + $0x140] sm:$0xff] %vm277, 0.0
        %320 = vst.msk [vmem:[#allocation2 + $0x148] sm:$0x3] %vm280, 0.0
        %321 = vst.msk [vmem:[#allocation2 + $0x150] sm:$0xff] %vm277, 0.0
        %322 = vst.msk [vmem:[#allocation2 + $0x158] sm:$0xff] %vm277, 0.0
        %323 = vst.msk [vmem:[#allocation2 + $0x160] sm:$0x3] %vm280, 0.0
        %324 = vst.msk [vmem:[#allocation2 + $0x168] sm:$0xff] %vm277, 0.0
        %325 = vst.msk [vmem:[#allocation2 + $0x170] sm:$0xff] %vm277, 0.0
        %326 = vst.msk [vmem:[#allocation2 + $0x178] sm:$0x3] %vm280, 0.0
        %327 = vst.msk [vmem:[#allocation2 + $0x180] sm:$0xff] %vm277, 0.0
        %328 = vst.msk [vmem:[#allocation2 + $0x188] sm:$0xff] %vm277, 0.0
        %329 = vst.msk [vmem:[#allocation2 + $0x190] sm:$0x3] %vm280, 0.0
        %330 = vst.msk [vmem:[#allocation2 + $0x198] sm:$0xff] %vm277, 0.0
        %331 = vst.msk [vmem:[#allocation2 + $0x1a0] sm:$0xff] %vm277, 0.0
        %332 = vst.msk [vmem:[#allocation2 + $0x1a8] sm:$0x3] %vm280, 0.0
        %v333 = vld [vmem:[%s276] sm:$0xff]
        %v334 = vld [vmem:[%s276 + $0x8] sm:$0xff]
        %v335 = vld [vmem:[%s276 + $0x10] sm:$0xff]
        %v336 = vld [vmem:[%s276 + $0x18] sm:$0xff]
        %v337 = vld [vmem:[%s276 + $0x20] sm:$0xff]
        %v338 = vld [vmem:[%s276 + $0x28] sm:$0xff]
        %v339 = vld [vmem:[%s276 + $0x30] sm:$0xff]
        %v340 = vld [vmem:[%s276 + $0x38] sm:$0xff]
        %v341 = vld [vmem:[%s276 + $0x40] sm:$0xff]
        %v342 = vld [vmem:[%s276 + $0x48] sm:$0xff]
        %v343 = vld [vmem:[%s276 + $0x50] sm:$0xff]
        %v344 = vld [vmem:[%s276 + $0x58] sm:$0xff]
        %v345 = vld [vmem:[%s276 + $0x60] sm:$0xff]
        %v346 = vld [vmem:[%s276 + $0x68] sm:$0xff]
        %v347 = vld [vmem:[%s276 + $0x70] sm:$0xff]
        %v348 = vld [vmem:[%s276 + $0x78] sm:$0xff]
        %v349 = vld [vmem:[%s276 + $0x80] sm:$0xff]
        %v350 = vld [vmem:[%s276 + $0x88] sm:$0xff]
        %v351 = vld [vmem:[%s276 + $0x90] sm:$0xff]
        %v352 = vld [vmem:[%s276 + $0x98] sm:$0xff]
        %v353 = vld [vmem:[%s276 + $0xa0] sm:$0xff]
        %v354 = vld [vmem:[%s276 + $0xa8] sm:$0xff]
        %v355 = vld [vmem:[%s276 + $0xb0] sm:$0xff]
        %v356 = vld [vmem:[%s276 + $0xb8] sm:$0xff]
        %v357 = vld [vmem:[%s276 + $0xc0] sm:$0xff]
        %v358 = vld [vmem:[%s276 + $0xc8] sm:$0xff]
        %v359 = vld [vmem:[%s276 + $0xd0] sm:$0xff]
        %v360 = vld [vmem:[%s276 + $0xd8] sm:$0xff]
        %v361 = vld [vmem:[%s276 + $0xe0] sm:$0xff]
        %v362 = vld [vmem:[%s276 + $0xe8] sm:$0xff]
        %v363 = vld [vmem:[%s276 + $0xf0] sm:$0xff]
        %v364 = vld [vmem:[%s276 + $0xf8] sm:$0xff]
        %s365 = scalar_lea.vmem [#allocation2], 24
        %366 = vst.msk [vmem:[%s365 + $0x1] sm:$0xff] %vm277, %v333
        %367 = vst.msk [vmem:[%s365 + $0x9] sm:$0xff] %vm277, %v334
        %368 = vst.msk [vmem:[%s365 + $0x19] sm:$0xff] %vm277, %v335
        %369 = vst.msk [vmem:[%s365 + $0x21] sm:$0xff] %vm277, %v336
        %370 = vst.msk [vmem:[%s365 + $0x31] sm:$0xff] %vm277, %v337
        %371 = vst.msk [vmem:[%s365 + $0x39] sm:$0xff] %vm277, %v338
        %372 = vst.msk [vmem:[%s365 + $0x49] sm:$0xff] %vm277, %v339
        %373 = vst.msk [vmem:[%s365 + $0x51] sm:$0xff] %vm277, %v340
        %374 = vst.msk [vmem:[%s365 + $0x61] sm:$0xff] %vm277, %v341
        %375 = vst.msk [vmem:[%s365 + $0x69] sm:$0xff] %vm277, %v342
        %376 = vst.msk [vmem:[%s365 + $0x79] sm:$0xff] %vm277, %v343
        %377 = vst.msk [vmem:[%s365 + $0x81] sm:$0xff] %vm277, %v344
        %378 = vst.msk [vmem:[%s365 + $0x91] sm:$0xff] %vm277, %v345
        %379 = vst.msk [vmem:[%s365 + $0x99] sm:$0xff] %vm277, %v346
        %380 = vst.msk [vmem:[%s365 + $0xa9] sm:$0xff] %vm277, %v347
        %381 = vst.msk [vmem:[%s365 + $0xb1] sm:$0xff] %vm277, %v348
        %382 = vst.msk [vmem:[%s365 + $0xc1] sm:$0xff] %vm277, %v349
        %383 = vst.msk [vmem:[%s365 + $0xc9] sm:$0xff] %vm277, %v350
        %384 = vst.msk [vmem:[%s365 + $0xd9] sm:$0xff] %vm277, %v351
        %385 = vst.msk [vmem:[%s365 + $0xe1] sm:$0xff] %vm277, %v352
        %386 = vst.msk [vmem:[%s365 + $0xf1] sm:$0xff] %vm277, %v353
        %387 = vst.msk [vmem:[%s365 + $0xf9] sm:$0xff] %vm277, %v354
        %388 = vst.msk [vmem:[%s365 + $0x109] sm:$0xff] %vm277, %v355
        %389 = vst.msk [vmem:[%s365 + $0x111] sm:$0xff] %vm277, %v356
        %390 = vst.msk [vmem:[%s365 + $0x121] sm:$0xff] %vm277, %v357
        %391 = vst.msk [vmem:[%s365 + $0x129] sm:$0xff] %vm277, %v358
        %392 = vst.msk [vmem:[%s365 + $0x139] sm:$0xff] %vm277, %v359
        %393 = vst.msk [vmem:[%s365 + $0x141] sm:$0xff] %vm277, %v360
        %394 = vst.msk [vmem:[%s365 + $0x151] sm:$0xff] %vm277, %v361
        %395 = vst.msk [vmem:[%s365 + $0x159] sm:$0xff] %vm277, %v362
        %396 = vst.msk [vmem:[%s365 + $0x169] sm:$0xff] %vm277, %v363
        %397 = vst.msk [vmem:[%s365 + $0x171] sm:$0xff] %vm277, %v364
        %v398 = vld [vmem:[#allocation2] ss:$2 sm:$0xff]
        %s399 = scalar_lea.vmem [#allocation2], 48
        %v400 = vld [vmem:[%s399] ss:$2 sm:$0xff]
        %s401 = scalar_lea.vmem [#allocation2], 96
        %v402 = vld [vmem:[%s401] ss:$2 sm:$0xff]
        %s403 = scalar_lea.vmem [#allocation2], 144
        %v404 = vld [vmem:[%s403] ss:$2 sm:$0xff]
        %s405 = scalar_lea.vmem [#allocation2], 192
        %v406 = vld [vmem:[%s405] ss:$2 sm:$0xff]
        %s407 = scalar_lea.vmem [#allocation2], 240
        %v408 = vld [vmem:[%s407] ss:$2 sm:$0xff]
        %s409 = scalar_lea.vmem [#allocation2], 288
        %v410 = vld [vmem:[%s409] ss:$2 sm:$0xff]
        %s411 = scalar_lea.vmem [#allocation2], 336
        %v412 = vld [vmem:[%s411] ss:$2 sm:$0xff]
        %v413 = vld [vmem:[%s1] sm:$0xff]
        %s414 = scalar_lea.vmem [#allocation2], 1
        %v415 = vld [vmem:[%s414] ss:$2 sm:$0xff]
        %s416 = scalar_lea.vmem [#allocation2], 49
        %v417 = vld [vmem:[%s416] ss:$2 sm:$0xff]
        %s418 = scalar_lea.vmem [#allocation2], 97
        %v419 = vld [vmem:[%s418] ss:$2 sm:$0xff]
        %s420 = scalar_lea.vmem [#allocation2], 145
        %v421 = vld [vmem:[%s420] ss:$2 sm:$0xff]
        %s422 = scalar_lea.vmem [#allocation2], 193
        %v423 = vld [vmem:[%s422] ss:$2 sm:$0xff]
        %s424 = scalar_lea.vmem [#allocation2], 241
        %v425 = vld [vmem:[%s424] ss:$2 sm:$0xff]
        %s426 = scalar_lea.vmem [#allocation2], 289
        %v427 = vld [vmem:[%s426] ss:$2 sm:$0xff]
        %s428 = scalar_lea.vmem [#allocation2], 337
        %v429 = vld [vmem:[%s428] ss:$2 sm:$0xff]
        %s430 = scalar_lea.vmem %s1, 8
        %v431 = vld [vmem:[%s430] sm:$0xff]
        %v433 = vsel %vm277, %v415, 0
        %v436 = vsel %vm277, %v417, 0
        %v439 = vsel %vm277, %v419, 0
        %v442 = vsel %vm277, %v421, 0
        %v445 = vsel %vm277, %v423, 0
        %v448 = vsel %vm277, %v425, 0
        %v451 = vsel %vm277, %v427, 0
        %v454 = vsel %vm277, %v429, 0
        %456 = vmatpush.msra.mxu0 0.0
        %457 = vmatpush.msra.mxu0 0.0
        %458 = vmatpush.msra.mxu0 0.0
        %459 = vmatpush.msra.mxu0 0.0
        %460 = vmatpush.msra.mxu0 0.0
        %461 = vmatpush.msra.mxu0 0.0
        %462 = vmatpush.msra.mxu0 0.0
        %463 = vmatpush.msra.mxu0 0.0
        %464 = vmatpush.msra.mxu0 0.0
        %465 = vmatpush.msra.mxu0 0.0
        %466 = vmatpush.msra.mxu0 0.0
        %467 = vmatpush.msra.mxu0 0.0
        %468 = vmatpush.msra.mxu0 0.0
        %469 = vmatpush.msra.mxu0 0.0
        %470 = vmatpush.msra.mxu0 0.0
        %471 = vmatpush.msra.mxu0 %v431
        %472 = vmatmul.f32.gmra.mxu0 %v433
        %v473 = vpop.f32.mrf.mxu0
        %v474 = vadd.f32 0.0, %v473
        %475 = vmatmul.f32.gmra.mxu0 %v436
        %v476 = vpop.f32.mrf.mxu0
        %v477 = vadd.f32 0.0, %v476
        %478 = vmatmul.f32.gmra.mxu0 %v439
        %v479 = vpop.f32.mrf.mxu0
        %v480 = vadd.f32 0.0, %v479
        %481 = vmatmul.f32.gmra.mxu0 %v442
        %v482 = vpop.f32.mrf.mxu0
        %v483 = vadd.f32 0.0, %v482
        %484 = vmatmul.f32.gmra.mxu0 %v445
        %v485 = vpop.f32.mrf.mxu0
        %v486 = vadd.f32 0.0, %v485
        %487 = vmatmul.f32.gmra.mxu0 %v448
        %v488 = vpop.f32.mrf.mxu0
        %v489 = vadd.f32 0.0, %v488
        %490 = vmatmul.f32.gmra.mxu0 %v451
        %v491 = vpop.f32.mrf.mxu0
        %v492 = vadd.f32 0.0, %v491
        %493 = vmatmul.f32.gmra.mxu0 %v454
        %v494 = vpop.f32.mrf.mxu0
        %v495 = vadd.f32 0.0, %v494
        %496 = vdwg.mxu0
        %v498 = vsel %vm277, %v398, 0
        %v501 = vsel %vm277, %v400, 0
        %v504 = vsel %vm277, %v402, 0
        %v507 = vsel %vm277, %v404, 0
        %v510 = vsel %vm277, %v406, 0
        %v513 = vsel %vm277, %v408, 0
        %v516 = vsel %vm277, %v410, 0
        %v519 = vsel %vm277, %v412, 0
        %521 = vmatpush.msra.mxu0 0.0
        %522 = vmatpush.msra.mxu0 0.0
        %523 = vmatpush.msra.mxu0 0.0
        %524 = vmatpush.msra.mxu0 0.0
        %525 = vmatpush.msra.mxu0 0.0
        %526 = vmatpush.msra.mxu0 0.0
        %527 = vmatpush.msra.mxu0 0.0
        %528 = vmatpush.msra.mxu0 0.0
        %529 = vmatpush.msra.mxu0 0.0
        %530 = vmatpush.msra.mxu0 0.0
        %531 = vmatpush.msra.mxu0 0.0
        %532 = vmatpush.msra.mxu0 0.0
        %533 = vmatpush.msra.mxu0 0.0
        %534 = vmatpush.msra.mxu0 0.0
        %535 = vmatpush.msra.mxu0 0.0
        %536 = vmatpush.msra.mxu0 %v413
        %537 = vmatmul.f32.gmra.mxu0 %v498
        %v538 = vpop.f32.mrf.mxu0
        %v539 = vadd.f32 %v474, %v538
        %540 = vmatmul.f32.gmra.mxu0 %v501
        %v541 = vpop.f32.mrf.mxu0
        %v542 = vadd.f32 %v477, %v541
        %543 = vmatmul.f32.gmra.mxu0 %v504
        %v544 = vpop.f32.mrf.mxu0
        %v545 = vadd.f32 %v480, %v544
        %546 = vmatmul.f32.gmra.mxu0 %v507
        %v547 = vpop.f32.mrf.mxu0
        %v548 = vadd.f32 %v483, %v547
        %549 = vmatmul.f32.gmra.mxu0 %v510
        %v550 = vpop.f32.mrf.mxu0
        %v551 = vadd.f32 %v486, %v550
        %552 = vmatmul.f32.gmra.mxu0 %v513
        %v553 = vpop.f32.mrf.mxu0
        %v554 = vadd.f32 %v489, %v553
        %555 = vmatmul.f32.gmra.mxu0 %v516
        %v556 = vpop.f32.mrf.mxu0
        %v557 = vadd.f32 %v492, %v556
        %558 = vmatmul.f32.gmra.mxu0 %v519
        %v559 = vpop.f32.mrf.mxu0
        %v560 = vadd.f32 %v495, %v559
        %561 = vdwg.mxu0
        %s562 = scalar_lea.vmem [#allocation2], 2
        %v563 = vld [vmem:[%s562] ss:$2 sm:$0xff]
        %s564 = scalar_lea.vmem [#allocation2], 50
        %v565 = vld [vmem:[%s564] ss:$2 sm:$0xff]
        %s566 = scalar_lea.vmem [#allocation2], 98
        %v567 = vld [vmem:[%s566] ss:$2 sm:$0xff]
        %s568 = scalar_lea.vmem [#allocation2], 146
        %v569 = vld [vmem:[%s568] ss:$2 sm:$0xff]
        %s570 = scalar_lea.vmem [#allocation2], 194
        %v571 = vld [vmem:[%s570] ss:$2 sm:$0xff]
        %s572 = scalar_lea.vmem [#allocation2], 242
        %v573 = vld [vmem:[%s572] ss:$2 sm:$0xff]
        %s574 = scalar_lea.vmem [#allocation2], 290
        %v575 = vld [vmem:[%s574] ss:$2 sm:$0xff]
        %s576 = scalar_lea.vmem [#allocation2], 338
        %v577 = vld [vmem:[%s576] ss:$2 sm:$0xff]
        %s578 = scalar_lea.vmem %s1, 16
        %v579 = vld [vmem:[%s578] sm:$0xff]
        %v581 = vsel %vm277, %v563, 0
        %v584 = vsel %vm277, %v565, 0
        %v587 = vsel %vm277, %v567, 0
        %v590 = vsel %vm277, %v569, 0
        %v593 = vsel %vm277, %v571, 0
        %v596 = vsel %vm277, %v573, 0
        %v599 = vsel %vm277, %v575, 0
        %v602 = vsel %vm277, %v577, 0
        %604 = vmatpush.msra.mxu0 0.0
        %605 = vmatpush.msra.mxu0 0.0
        %606 = vmatpush.msra.mxu0 0.0
        %607 = vmatpush.msra.mxu0 0.0
        %608 = vmatpush.msra.mxu0 0.0
        %609 = vmatpush.msra.mxu0 0.0
        %610 = vmatpush.msra.mxu0 0.0
        %611 = vmatpush.msra.mxu0 0.0
        %612 = vmatpush.msra.mxu0 0.0
        %613 = vmatpush.msra.mxu0 0.0
        %614 = vmatpush.msra.mxu0 0.0
        %615 = vmatpush.msra.mxu0 0.0
        %616 = vmatpush.msra.mxu0 0.0
        %617 = vmatpush.msra.mxu0 0.0
        %618 = vmatpush.msra.mxu0 0.0
        %619 = vmatpush.msra.mxu0 %v579
        %620 = vmatmul.f32.gmra.mxu0 %v581
        %v621 = vpop.f32.mrf.mxu0
        %v622 = vadd.f32 0.0, %v621
        %623 = vmatmul.f32.gmra.mxu0 %v584
        %v624 = vpop.f32.mrf.mxu0
        %v625 = vadd.f32 0.0, %v624
        %626 = vmatmul.f32.gmra.mxu0 %v587
        %v627 = vpop.f32.mrf.mxu0
        %v628 = vadd.f32 0.0, %v627
        %629 = vmatmul.f32.gmra.mxu0 %v590
        %v630 = vpop.f32.mrf.mxu0
        %v631 = vadd.f32 0.0, %v630
        %632 = vmatmul.f32.gmra.mxu0 %v593
        %v633 = vpop.f32.mrf.mxu0
        %v634 = vadd.f32 0.0, %v633
        %635 = vmatmul.f32.gmra.mxu0 %v596
        %v636 = vpop.f32.mrf.mxu0
        %v637 = vadd.f32 0.0, %v636
        %638 = vmatmul.f32.gmra.mxu0 %v599
        %v639 = vpop.f32.mrf.mxu0
        %v640 = vadd.f32 0.0, %v639
        %641 = vmatmul.f32.gmra.mxu0 %v602
        %v642 = vpop.f32.mrf.mxu0
        %v643 = vadd.f32 0.0, %v642
        %644 = vdwg.mxu0
        %v645 = vadd.f32 %v539, %v622
        %v646 = vadd.f32 %v542, %v625
        %v647 = vadd.f32 %v545, %v628
        %v648 = vadd.f32 %v548, %v631
        %v649 = vadd.f32 %v551, %v634
        %v650 = vadd.f32 %v554, %v637
        %v651 = vadd.f32 %v557, %v640
        %v652 = vadd.f32 %v560, %v643
        %v653 = vld [vmem:[%s365] ss:$2 sm:$0xff]
        %s654 = scalar_lea.vmem %s365, 48 [#allocation2]
        %v655 = vld [vmem:[%s654] ss:$2 sm:$0xff]
        %s656 = scalar_lea.vmem %s365, 96 [#allocation2]
        %v657 = vld [vmem:[%s656] ss:$2 sm:$0xff]
        %s658 = scalar_lea.vmem %s365, 144 [#allocation2]
        %v659 = vld [vmem:[%s658] ss:$2 sm:$0xff]
        %s660 = scalar_lea.vmem %s365, 192 [#allocation2]
        %v661 = vld [vmem:[%s660] ss:$2 sm:$0xff]
        %s662 = scalar_lea.vmem %s365, 240 [#allocation2]
        %v663 = vld [vmem:[%s662] ss:$2 sm:$0xff]
        %s664 = scalar_lea.vmem %s365, 288 [#allocation2]
        %v665 = vld [vmem:[%s664] ss:$2 sm:$0xff]
        %s666 = scalar_lea.vmem %s365, 336 [#allocation2]
        %v667 = vld [vmem:[%s666] ss:$2 sm:$0xff]
        %s668 = scalar_lea.vmem %s1, 24
        %v669 = vld [vmem:[%s668] sm:$0xff]
        %v671 = vsel %vm277, %v653, 0
        %v674 = vsel %vm277, %v655, 0
        %v677 = vsel %vm277, %v657, 0
        %v680 = vsel %vm277, %v659, 0
        %v683 = vsel %vm277, %v661, 0
        %v686 = vsel %vm277, %v663, 0
        %v689 = vsel %vm277, %v665, 0
        %v692 = vsel %vm277, %v667, 0
        %694 = vmatpush.msra.mxu0 0.0
        %695 = vmatpush.msra.mxu0 0.0
        %696 = vmatpush.msra.mxu0 0.0
        %697 = vmatpush.msra.mxu0 0.0
        %698 = vmatpush.msra.mxu0 0.0
        %699 = vmatpush.msra.mxu0 0.0
        %700 = vmatpush.msra.mxu0 0.0
        %701 = vmatpush.msra.mxu0 0.0
        %702 = vmatpush.msra.mxu0 0.0
        %703 = vmatpush.msra.mxu0 0.0
        %704 = vmatpush.msra.mxu0 0.0
        %705 = vmatpush.msra.mxu0 0.0
        %706 = vmatpush.msra.mxu0 0.0
        %707 = vmatpush.msra.mxu0 0.0
        %708 = vmatpush.msra.mxu0 0.0
        %709 = vmatpush.msra.mxu0 %v669
        %710 = vmatmul.f32.gmra.mxu0 %v671
        %v711 = vpop.f32.mrf.mxu0
        %v712 = vadd.f32 0.0, %v711
        %713 = vmatmul.f32.gmra.mxu0 %v674
        %v714 = vpop.f32.mrf.mxu0
        %v715 = vadd.f32 0.0, %v714
        %716 = vmatmul.f32.gmra.mxu0 %v677
        %v717 = vpop.f32.mrf.mxu0
        %v718 = vadd.f32 0.0, %v717
        %719 = vmatmul.f32.gmra.mxu0 %v680
        %v720 = vpop.f32.mrf.mxu0
        %v721 = vadd.f32 0.0, %v720
        %722 = vmatmul.f32.gmra.mxu0 %v683
        %v723 = vpop.f32.mrf.mxu0
        %v724 = vadd.f32 0.0, %v723
        %725 = vmatmul.f32.gmra.mxu0 %v686
        %v726 = vpop.f32.mrf.mxu0
        %v727 = vadd.f32 0.0, %v726
        %728 = vmatmul.f32.gmra.mxu0 %v689
        %v729 = vpop.f32.mrf.mxu0
        %v730 = vadd.f32 0.0, %v729
        %731 = vmatmul.f32.gmra.mxu0 %v692
        %v732 = vpop.f32.mrf.mxu0
        %v733 = vadd.f32 0.0, %v732
        %734 = vdwg.mxu0
        %v735 = vadd.f32 %v645, %v712
        %v736 = vadd.f32 %v646, %v715
        %v737 = vadd.f32 %v647, %v718
        %v738 = vadd.f32 %v648, %v721
        %v739 = vadd.f32 %v649, %v724
        %v740 = vadd.f32 %v650, %v727
        %v741 = vadd.f32 %v651, %v730
        %v742 = vadd.f32 %v652, %v733
        %s743 = scalar_lea.vmem %s365, 1 [#allocation2]
        %v744 = vld [vmem:[%s743] ss:$2 sm:$0xff]
        %s745 = scalar_lea.vmem %s365, 49 [#allocation2]
        %v746 = vld [vmem:[%s745] ss:$2 sm:$0xff]
        %s747 = scalar_lea.vmem %s365, 97 [#allocation2]
        %v748 = vld [vmem:[%s747] ss:$2 sm:$0xff]
        %s749 = scalar_lea.vmem %s365, 145 [#allocation2]
        %v750 = vld [vmem:[%s749] ss:$2 sm:$0xff]
        %s751 = scalar_lea.vmem %s365, 193 [#allocation2]
        %v752 = vld [vmem:[%s751] ss:$2 sm:$0xff]
        %s753 = scalar_lea.vmem %s365, 241 [#allocation2]
        %v754 = vld [vmem:[%s753] ss:$2 sm:$0xff]
        %s755 = scalar_lea.vmem %s365, 289 [#allocation2]
        %v756 = vld [vmem:[%s755] ss:$2 sm:$0xff]
        %s757 = scalar_lea.vmem %s365, 337 [#allocation2]
        %v758 = vld [vmem:[%s757] ss:$2 sm:$0xff]
        %s759 = scalar_lea.vmem %s1, 32
        %v760 = vld [vmem:[%s759] sm:$0xff]
        %v762 = vsel %vm277, %v744, 0
        %v765 = vsel %vm277, %v746, 0
        %v768 = vsel %vm277, %v748, 0
        %v771 = vsel %vm277, %v750, 0
        %v774 = vsel %vm277, %v752, 0
        %v777 = vsel %vm277, %v754, 0
        %v780 = vsel %vm277, %v756, 0
        %v783 = vsel %vm277, %v758, 0
        %785 = vmatpush.msra.mxu0 0.0
        %786 = vmatpush.msra.mxu0 0.0
        %787 = vmatpush.msra.mxu0 0.0
        %788 = vmatpush.msra.mxu0 0.0
        %789 = vmatpush.msra.mxu0 0.0
        %790 = vmatpush.msra.mxu0 0.0
        %791 = vmatpush.msra.mxu0 0.0
        %792 = vmatpush.msra.mxu0 0.0
        %793 = vmatpush.msra.mxu0 0.0
        %794 = vmatpush.msra.mxu0 0.0
        %795 = vmatpush.msra.mxu0 0.0
        %796 = vmatpush.msra.mxu0 0.0
        %797 = vmatpush.msra.mxu0 0.0
        %798 = vmatpush.msra.mxu0 0.0
        %799 = vmatpush.msra.mxu0 0.0
        %800 = vmatpush.msra.mxu0 %v760
        %801 = vmatmul.f32.gmra.mxu0 %v762
        %v802 = vpop.f32.mrf.mxu0
        %v803 = vadd.f32 0.0, %v802
        %804 = vmatmul.f32.gmra.mxu0 %v765
        %v805 = vpop.f32.mrf.mxu0
        %v806 = vadd.f32 0.0, %v805
        %807 = vmatmul.f32.gmra.mxu0 %v768
        %v808 = vpop.f32.mrf.mxu0
        %v809 = vadd.f32 0.0, %v808
        %810 = vmatmul.f32.gmra.mxu0 %v771
        %v811 = vpop.f32.mrf.mxu0
        %v812 = vadd.f32 0.0, %v811
        %813 = vmatmul.f32.gmra.mxu0 %v774
        %v814 = vpop.f32.mrf.mxu0
        %v815 = vadd.f32 0.0, %v814
        %816 = vmatmul.f32.gmra.mxu0 %v777
        %v817 = vpop.f32.mrf.mxu0
        %v818 = vadd.f32 0.0, %v817
        %819 = vmatmul.f32.gmra.mxu0 %v780
        %v820 = vpop.f32.mrf.mxu0
        %v821 = vadd.f32 0.0, %v820
        %822 = vmatmul.f32.gmra.mxu0 %v783
        %v823 = vpop.f32.mrf.mxu0
        %v824 = vadd.f32 0.0, %v823
        %825 = vdwg.mxu0
        %v826 = vadd.f32 %v735, %v803
        %v827 = vadd.f32 %v736, %v806
        %v828 = vadd.f32 %v737, %v809
        %v829 = vadd.f32 %v738, %v812
        %v830 = vadd.f32 %v739, %v815
        %v831 = vadd.f32 %v740, %v818
        %v832 = vadd.f32 %v741, %v821
        %v833 = vadd.f32 %v742, %v824
        %s834 = scalar_lea.vmem %s365, 2 [#allocation2]
        %v835 = vld [vmem:[%s834] ss:$2 sm:$0xff]
        %s836 = scalar_lea.vmem %s365, 50 [#allocation2]
        %v837 = vld [vmem:[%s836] ss:$2 sm:$0xff]
        %s838 = scalar_lea.vmem %s365, 98 [#allocation2]
        %v839 = vld [vmem:[%s838] ss:$2 sm:$0xff]
        %s840 = scalar_lea.vmem %s365, 146 [#allocation2]
        %v841 = vld [vmem:[%s840] ss:$2 sm:$0xff]
        %s842 = scalar_lea.vmem %s365, 194 [#allocation2]
        %v843 = vld [vmem:[%s842] ss:$2 sm:$0xff]
        %s844 = scalar_lea.vmem %s365, 242 [#allocation2]
        %v845 = vld [vmem:[%s844] ss:$2 sm:$0xff]
        %s846 = scalar_lea.vmem %s365, 290 [#allocation2]
        %v847 = vld [vmem:[%s846] ss:$2 sm:$0xff]
        %s848 = scalar_lea.vmem %s365, 338 [#allocation2]
        %v849 = vld [vmem:[%s848] ss:$2 sm:$0xff]
        %s850 = scalar_lea.vmem %s1, 40
        %v851 = vld [vmem:[%s850] sm:$0xff]
        %v853 = vsel %vm277, %v835, 0
        %v856 = vsel %vm277, %v837, 0
        %v859 = vsel %vm277, %v839, 0
        %v862 = vsel %vm277, %v841, 0
        %v865 = vsel %vm277, %v843, 0
        %v868 = vsel %vm277, %v845, 0
        %v871 = vsel %vm277, %v847, 0
        %v874 = vsel %vm277, %v849, 0
        %876 = vmatpush.msra.mxu0 0.0
        %877 = vmatpush.msra.mxu0 0.0
        %878 = vmatpush.msra.mxu0 0.0
        %879 = vmatpush.msra.mxu0 0.0
        %880 = vmatpush.msra.mxu0 0.0
        %881 = vmatpush.msra.mxu0 0.0
        %882 = vmatpush.msra.mxu0 0.0
        %883 = vmatpush.msra.mxu0 0.0
        %884 = vmatpush.msra.mxu0 0.0
        %885 = vmatpush.msra.mxu0 0.0
        %886 = vmatpush.msra.mxu0 0.0
        %887 = vmatpush.msra.mxu0 0.0
        %888 = vmatpush.msra.mxu0 0.0
        %889 = vmatpush.msra.mxu0 0.0
        %890 = vmatpush.msra.mxu0 0.0
        %891 = vmatpush.msra.mxu0 %v851
        %892 = vmatmul.f32.gmra.mxu0 %v853
        %v893 = vpop.f32.mrf.mxu0
        %v894 = vadd.f32 0.0, %v893
        %895 = vmatmul.f32.gmra.mxu0 %v856
        %v896 = vpop.f32.mrf.mxu0
        %v897 = vadd.f32 0.0, %v896
        %898 = vmatmul.f32.gmra.mxu0 %v859
        %v899 = vpop.f32.mrf.mxu0
        %v900 = vadd.f32 0.0, %v899
        %901 = vmatmul.f32.gmra.mxu0 %v862
        %v902 = vpop.f32.mrf.mxu0
        %v903 = vadd.f32 0.0, %v902
        %904 = vmatmul.f32.gmra.mxu0 %v865
        %v905 = vpop.f32.mrf.mxu0
        %v906 = vadd.f32 0.0, %v905
        %907 = vmatmul.f32.gmra.mxu0 %v868
        %v908 = vpop.f32.mrf.mxu0
        %v909 = vadd.f32 0.0, %v908
        %910 = vmatmul.f32.gmra.mxu0 %v871
        %v911 = vpop.f32.mrf.mxu0
        %v912 = vadd.f32 0.0, %v911
        %913 = vmatmul.f32.gmra.mxu0 %v874
        %v914 = vpop.f32.mrf.mxu0
        %v915 = vadd.f32 0.0, %v914
        %916 = vdwg.mxu0
        %v917 = vadd.f32 %v826, %v894
        %v918 = vadd.f32 %v827, %v897
        %v919 = vadd.f32 %v828, %v900
        %v920 = vadd.f32 %v829, %v903
        %v921 = vadd.f32 %v830, %v906
        %v922 = vadd.f32 %v831, %v909
        %v923 = vadd.f32 %v832, %v912
        %v924 = vadd.f32 %v833, %v915
        %s925 = scalar_lea.vmem [#allocation2], 48
        %v926 = vld [vmem:[%s925] ss:$2 sm:$0xff]
        %s927 = scalar_lea.vmem %s925, 48 [#allocation2]
        %v928 = vld [vmem:[%s927] ss:$2 sm:$0xff]
        %s929 = scalar_lea.vmem %s925, 96 [#allocation2]
        %v930 = vld [vmem:[%s929] ss:$2 sm:$0xff]
        %s931 = scalar_lea.vmem %s925, 144 [#allocation2]
        %v932 = vld [vmem:[%s931] ss:$2 sm:$0xff]
        %s933 = scalar_lea.vmem %s925, 192 [#allocation2]
        %v934 = vld [vmem:[%s933] ss:$2 sm:$0xff]
        %s935 = scalar_lea.vmem %s925, 240 [#allocation2]
        %v936 = vld [vmem:[%s935] ss:$2 sm:$0xff]
        %s937 = scalar_lea.vmem %s925, 288 [#allocation2]
        %v938 = vld [vmem:[%s937] ss:$2 sm:$0xff]
        %s939 = scalar_lea.vmem %s925, 336 [#allocation2]
        %v940 = vld [vmem:[%s939] ss:$2 sm:$0xff]
        %s941 = scalar_lea.vmem %s1, 48
        %v942 = vld [vmem:[%s941] sm:$0xff]
        %v944 = vsel %vm277, %v926, 0
        %v947 = vsel %vm277, %v928, 0
        %v950 = vsel %vm277, %v930, 0
        %v953 = vsel %vm277, %v932, 0
        %v956 = vsel %vm277, %v934, 0
        %v959 = vsel %vm277, %v936, 0
        %v962 = vsel %vm277, %v938, 0
        %v965 = vsel %vm277, %v940, 0
        %967 = vmatpush.msra.mxu0 0.0
        %968 = vmatpush.msra.mxu0 0.0
        %969 = vmatpush.msra.mxu0 0.0
        %970 = vmatpush.msra.mxu0 0.0
        %971 = vmatpush.msra.mxu0 0.0
        %972 = vmatpush.msra.mxu0 0.0
        %973 = vmatpush.msra.mxu0 0.0
        %974 = vmatpush.msra.mxu0 0.0
        %975 = vmatpush.msra.mxu0 0.0
        %976 = vmatpush.msra.mxu0 0.0
        %977 = vmatpush.msra.mxu0 0.0
        %978 = vmatpush.msra.mxu0 0.0
        %979 = vmatpush.msra.mxu0 0.0
        %980 = vmatpush.msra.mxu0 0.0
        %981 = vmatpush.msra.mxu0 0.0
        %982 = vmatpush.msra.mxu0 %v942
        %983 = vmatmul.f32.gmra.mxu0 %v944
        %v984 = vpop.f32.mrf.mxu0
        %v985 = vadd.f32 0.0, %v984
        %986 = vmatmul.f32.gmra.mxu0 %v947
        %v987 = vpop.f32.mrf.mxu0
        %v988 = vadd.f32 0.0, %v987
        %989 = vmatmul.f32.gmra.mxu0 %v950
        %v990 = vpop.f32.mrf.mxu0
        %v991 = vadd.f32 0.0, %v990
        %992 = vmatmul.f32.gmra.mxu0 %v953
        %v993 = vpop.f32.mrf.mxu0
        %v994 = vadd.f32 0.0, %v993
        %995 = vmatmul.f32.gmra.mxu0 %v956
        %v996 = vpop.f32.mrf.mxu0
        %v997 = vadd.f32 0.0, %v996
        %998 = vmatmul.f32.gmra.mxu0 %v959
        %v999 = vpop.f32.mrf.mxu0
        %v1000 = vadd.f32 0.0, %v999
        %1001 = vmatmul.f32.gmra.mxu0 %v962
        %v1002 = vpop.f32.mrf.mxu0
        %v1003 = vadd.f32 0.0, %v1002
        %1004 = vmatmul.f32.gmra.mxu0 %v965
        %v1005 = vpop.f32.mrf.mxu0
        %v1006 = vadd.f32 0.0, %v1005
        %1007 = vdwg.mxu0
        %v1008 = vadd.f32 %v917, %v985
        %v1009 = vadd.f32 %v918, %v988
        %v1010 = vadd.f32 %v919, %v991
        %v1011 = vadd.f32 %v920, %v994
        %v1012 = vadd.f32 %v921, %v997
        %v1013 = vadd.f32 %v922, %v1000
        %v1014 = vadd.f32 %v923, %v1003
        %v1015 = vadd.f32 %v924, %v1006
        %s1016 = scalar_lea.vmem %s925, 1 [#allocation2]
        %v1017 = vld [vmem:[%s1016] ss:$2 sm:$0xff]
        %s1018 = scalar_lea.vmem %s925, 49 [#allocation2]
        %v1019 = vld [vmem:[%s1018] ss:$2 sm:$0xff]
        %s1020 = scalar_lea.vmem %s925, 97 [#allocation2]
        %v1021 = vld [vmem:[%s1020] ss:$2 sm:$0xff]
        %s1022 = scalar_lea.vmem %s925, 145 [#allocation2]
        %v1023 = vld [vmem:[%s1022] ss:$2 sm:$0xff]
        %s1024 = scalar_lea.vmem %s925, 193 [#allocation2]
        %v1025 = vld [vmem:[%s1024] ss:$2 sm:$0xff]
        %s1026 = scalar_lea.vmem %s925, 241 [#allocation2]
        %v1027 = vld [vmem:[%s1026] ss:$2 sm:$0xff]
        %s1028 = scalar_lea.vmem %s925, 289 [#allocation2]
        %v1029 = vld [vmem:[%s1028] ss:$2 sm:$0xff]
        %s1030 = scalar_lea.vmem %s925, 337 [#allocation2]
        %v1031 = vld [vmem:[%s1030] ss:$2 sm:$0xff]
        %s1032 = scalar_lea.vmem %s1, 56
        %v1033 = vld [vmem:[%s1032] sm:$0xff]
        %v1035 = vsel %vm277, %v1017, 0
        %v1038 = vsel %vm277, %v1019, 0
        %v1041 = vsel %vm277, %v1021, 0
        %v1044 = vsel %vm277, %v1023, 0
        %v1047 = vsel %vm277, %v1025, 0
        %v1050 = vsel %vm277, %v1027, 0
        %v1053 = vsel %vm277, %v1029, 0
        %v1056 = vsel %vm277, %v1031, 0
        %1058 = vmatpush.msra.mxu0 0.0
        %1059 = vmatpush.msra.mxu0 0.0
        %1060 = vmatpush.msra.mxu0 0.0
        %1061 = vmatpush.msra.mxu0 0.0
        %1062 = vmatpush.msra.mxu0 0.0
        %1063 = vmatpush.msra.mxu0 0.0
        %1064 = vmatpush.msra.mxu0 0.0
        %1065 = vmatpush.msra.mxu0 0.0
        %1066 = vmatpush.msra.mxu0 0.0
        %1067 = vmatpush.msra.mxu0 0.0
        %1068 = vmatpush.msra.mxu0 0.0
        %1069 = vmatpush.msra.mxu0 0.0
        %1070 = vmatpush.msra.mxu0 0.0
        %1071 = vmatpush.msra.mxu0 0.0
        %1072 = vmatpush.msra.mxu0 0.0
        %1073 = vmatpush.msra.mxu0 %v1033
        %1074 = vmatmul.f32.gmra.mxu0 %v1035
        %v1075 = vpop.f32.mrf.mxu0
        %v1076 = vadd.f32 0.0, %v1075
        %1077 = vmatmul.f32.gmra.mxu0 %v1038
        %v1078 = vpop.f32.mrf.mxu0
        %v1079 = vadd.f32 0.0, %v1078
        %1080 = vmatmul.f32.gmra.mxu0 %v1041
        %v1081 = vpop.f32.mrf.mxu0
        %v1082 = vadd.f32 0.0, %v1081
        %1083 = vmatmul.f32.gmra.mxu0 %v1044
        %v1084 = vpop.f32.mrf.mxu0
        %v1085 = vadd.f32 0.0, %v1084
        %1086 = vmatmul.f32.gmra.mxu0 %v1047
        %v1087 = vpop.f32.mrf.mxu0
        %v1088 = vadd.f32 0.0, %v1087
        %1089 = vmatmul.f32.gmra.mxu0 %v1050
        %v1090 = vpop.f32.mrf.mxu0
        %v1091 = vadd.f32 0.0, %v1090
        %1092 = vmatmul.f32.gmra.mxu0 %v1053
        %v1093 = vpop.f32.mrf.mxu0
        %v1094 = vadd.f32 0.0, %v1093
        %1095 = vmatmul.f32.gmra.mxu0 %v1056
        %v1096 = vpop.f32.mrf.mxu0
        %v1097 = vadd.f32 0.0, %v1096
        %1098 = vdwg.mxu0
        %v1099 = vadd.f32 %v1008, %v1076
        %v1100 = vadd.f32 %v1009, %v1079
        %v1101 = vadd.f32 %v1010, %v1082
        %v1102 = vadd.f32 %v1011, %v1085
        %v1103 = vadd.f32 %v1012, %v1088
        %v1104 = vadd.f32 %v1013, %v1091
        %v1105 = vadd.f32 %v1014, %v1094
        %v1106 = vadd.f32 %v1015, %v1097
        %s1107 = scalar_lea.vmem %s925, 2 [#allocation2]
        %v1108 = vld [vmem:[%s1107] ss:$2 sm:$0xff]
        %s1109 = scalar_lea.vmem %s925, 50 [#allocation2]
        %v1110 = vld [vmem:[%s1109] ss:$2 sm:$0xff]
        %s1111 = scalar_lea.vmem %s925, 98 [#allocation2]
        %v1112 = vld [vmem:[%s1111] ss:$2 sm:$0xff]
        %s1113 = scalar_lea.vmem %s925, 146 [#allocation2]
        %v1114 = vld [vmem:[%s1113] ss:$2 sm:$0xff]
        %s1115 = scalar_lea.vmem %s925, 194 [#allocation2]
        %v1116 = vld [vmem:[%s1115] ss:$2 sm:$0xff]
        %s1117 = scalar_lea.vmem %s925, 242 [#allocation2]
        %v1118 = vld [vmem:[%s1117] ss:$2 sm:$0xff]
        %s1119 = scalar_lea.vmem %s925, 290 [#allocation2]
        %v1120 = vld [vmem:[%s1119] ss:$2 sm:$0xff]
        %s1121 = scalar_lea.vmem %s925, 338 [#allocation2]
        %v1122 = vld [vmem:[%s1121] ss:$2 sm:$0xff]
        %s1123 = scalar_lea.vmem %s1, 64
        %v1124 = vld [vmem:[%s1123] sm:$0xff]
        %v1126 = vsel %vm277, %v1108, 0
        %v1129 = vsel %vm277, %v1110, 0
        %v1132 = vsel %vm277, %v1112, 0
        %v1135 = vsel %vm277, %v1114, 0
        %v1138 = vsel %vm277, %v1116, 0
        %v1141 = vsel %vm277, %v1118, 0
        %v1144 = vsel %vm277, %v1120, 0
        %v1147 = vsel %vm277, %v1122, 0
        %1149 = vmatpush.msra.mxu0 0.0
        %1150 = vmatpush.msra.mxu0 0.0
        %1151 = vmatpush.msra.mxu0 0.0
        %1152 = vmatpush.msra.mxu0 0.0
        %1153 = vmatpush.msra.mxu0 0.0
        %1154 = vmatpush.msra.mxu0 0.0
        %1155 = vmatpush.msra.mxu0 0.0
        %1156 = vmatpush.msra.mxu0 0.0
        %1157 = vmatpush.msra.mxu0 0.0
        %1158 = vmatpush.msra.mxu0 0.0
        %1159 = vmatpush.msra.mxu0 0.0
        %1160 = vmatpush.msra.mxu0 0.0
        %1161 = vmatpush.msra.mxu0 0.0
        %1162 = vmatpush.msra.mxu0 0.0
        %1163 = vmatpush.msra.mxu0 0.0
        %1164 = vmatpush.msra.mxu0 %v1124
        %1165 = vmatmul.f32.gmra.mxu0 %v1126
        %v1166 = vpop.f32.mrf.mxu0
        %v1167 = vadd.f32 0.0, %v1166
        %1168 = vmatmul.f32.gmra.mxu0 %v1129
        %v1169 = vpop.f32.mrf.mxu0
        %v1170 = vadd.f32 0.0, %v1169
        %1171 = vmatmul.f32.gmra.mxu0 %v1132
        %v1172 = vpop.f32.mrf.mxu0
        %v1173 = vadd.f32 0.0, %v1172
        %1174 = vmatmul.f32.gmra.mxu0 %v1135
        %v1175 = vpop.f32.mrf.mxu0
        %v1176 = vadd.f32 0.0, %v1175
        %1177 = vmatmul.f32.gmra.mxu0 %v1138
        %v1178 = vpop.f32.mrf.mxu0
        %v1179 = vadd.f32 0.0, %v1178
        %1180 = vmatmul.f32.gmra.mxu0 %v1141
        %v1181 = vpop.f32.mrf.mxu0
        %v1182 = vadd.f32 0.0, %v1181
        %1183 = vmatmul.f32.gmra.mxu0 %v1144
        %v1184 = vpop.f32.mrf.mxu0
        %v1185 = vadd.f32 0.0, %v1184
        %1186 = vmatmul.f32.gmra.mxu0 %v1147
        %v1187 = vpop.f32.mrf.mxu0
        %v1188 = vadd.f32 0.0, %v1187
        %1189 = vdwg.mxu0
        %v1190 = vadd.f32 %v1099, %v1167
        %v1191 = vadd.f32 %v1100, %v1170
        %v1192 = vadd.f32 %v1101, %v1173
        %v1193 = vadd.f32 %v1102, %v1176
        %v1194 = vadd.f32 %v1103, %v1179
        %v1195 = vadd.f32 %v1104, %v1182
        %v1196 = vadd.f32 %v1105, %v1185
        %v1197 = vadd.f32 %v1106, %v1188
        %v1198 = vld [vmem:[%s2] sm:$0x1]
        %v1200 = vperm.slane %v1198, 0
        %v1202 = vadd.f32 %v1190, %v1200
        %v1203 = vadd.f32 %v1191, %v1200
        %v1204 = vadd.f32 %v1192, %v1200
        %v1205 = vadd.f32 %v1193, %v1200
        %v1206 = vadd.f32 %v1194, %v1200
        %v1207 = vadd.f32 %v1195, %v1200
        %v1208 = vadd.f32 %v1196, %v1200
        %v1209 = vadd.f32 %v1197, %v1200
        %v1210 = vmax.f32 %v1202, 0.0
        %v1211 = vmax.f32 %v1203, 0.0
        %v1212 = vmax.f32 %v1204, 0.0
        %v1213 = vmax.f32 %v1205, 0.0
        %v1214 = vmax.f32 %v1206, 0.0
        %v1215 = vmax.f32 %v1207, 0.0
        %v1216 = vmax.f32 %v1208, 0.0
        %v1217 = vmax.f32 %v1209, 0.0
        %vm1218 = vcmask 130048
        %1219 = vst.msk [vmem:[#allocation3] sm:$0xff] %vm1218, 0.0
        %vm1220 = vcmask 123904
        %1221 = vst.msk [vmem:[#allocation3 + $0x8] sm:$0x3] %vm1220, 0.0
        %1222 = vst.msk [vmem:[#allocation3 + $0x10] sm:$0xff] %vm1218, 0.0
        %1223 = vst.msk [vmem:[#allocation3 + $0x18] sm:$0x3] %vm1220, 0.0
        %1224 = vst.msk [vmem:[#allocation3 + $0x20] sm:$0xff] %vm1218, 0.0
        %1225 = vst.msk [vmem:[#allocation3 + $0x28] sm:$0x3] %vm1220, 0.0
        %1226 = vst.msk [vmem:[#allocation3 + $0x30] sm:$0xff] %vm1218, 0.0
        %1227 = vst.msk [vmem:[#allocation3 + $0x38] sm:$0x3] %vm1220, 0.0
        %1228 = vst.msk [vmem:[#allocation3 + $0x40] sm:$0xff] %vm1218, 0.0
        %1229 = vst.msk [vmem:[#allocation3 + $0x48] sm:$0x3] %vm1220, 0.0
        %1230 = vst.msk [vmem:[#allocation3 + $0x50] sm:$0xff] %vm1218, 0.0
        %1231 = vst.msk [vmem:[#allocation3 + $0x58] sm:$0x3] %vm1220, 0.0
        %1232 = vst.msk [vmem:[#allocation3 + $0x60] sm:$0xff] %vm1218, 0.0
        %1233 = vst.msk [vmem:[#allocation3 + $0x68] sm:$0x3] %vm1220, 0.0
        %1234 = vst.msk [vmem:[#allocation3 + $0x70] sm:$0xff] %vm1218, 0.0
        %1235 = vst.msk [vmem:[#allocation3 + $0x78] sm:$0x3] %vm1220, 0.0
        %1236 = vst.msk [vmem:[#allocation3 + $0x80] sm:$0xff] %vm1218, 0.0
        %1237 = vst.msk [vmem:[#allocation3 + $0x88] sm:$0x3] %vm1220, 0.0
        %1238 = vst.msk [vmem:[#allocation3 + $0x90] sm:$0xff] %vm1218, 0.0
        %1239 = vst.msk [vmem:[#allocation3 + $0x98] sm:$0x3] %vm1220, 0.0
        %s1240 = scalar_lea.vmem [#allocation3], 16
        %1241 = vst.msk [vmem:[%s1240 + $0x1] sm:$0xff] %vm1218, %v1210
        %1242 = vst.msk [vmem:[%s1240 + $0x11] sm:$0xff] %vm1218, %v1211
        %1243 = vst.msk [vmem:[%s1240 + $0x21] sm:$0xff] %vm1218, %v1212
        %1244 = vst.msk [vmem:[%s1240 + $0x31] sm:$0xff] %vm1218, %v1213
        %1245 = vst.msk [vmem:[%s1240 + $0x41] sm:$0xff] %vm1218, %v1214
        %1246 = vst.msk [vmem:[%s1240 + $0x51] sm:$0xff] %vm1218, %v1215
        %1247 = vst.msk [vmem:[%s1240 + $0x61] sm:$0xff] %vm1218, %v1216
        %1248 = vst.msk [vmem:[%s1240 + $0x71] sm:$0xff] %vm1218, %v1217
        %v1249 = vld [vmem:[#allocation3] sm:$0xff]
        %v1250 = vld [vmem:[#allocation3 + $0x10] sm:$0xff]
        %v1251 = vld [vmem:[#allocation3 + $0x20] sm:$0xff]
        %v1252 = vld [vmem:[#allocation3 + $0x30] sm:$0xff]
        %v1253 = vld [vmem:[#allocation3 + $0x40] sm:$0xff]
        %v1254 = vld [vmem:[#allocation3 + $0x50] sm:$0xff]
        %v1255 = vld [vmem:[#allocation3 + $0x60] sm:$0xff]
        %v1256 = vld [vmem:[#allocation3 + $0x70] sm:$0xff]
        %v1257 = vld [vmem:[%s3] sm:$0xff]
        %v1258 = vld [vmem:[%s3 + $0x8] sm:$0xff]
        %v1259 = vld [vmem:[#allocation3 + $0x1] sm:$0xff]
        %v1260 = vld [vmem:[#allocation3 + $0x11] sm:$0xff]
        %v1261 = vld [vmem:[#allocation3 + $0x21] sm:$0xff]
        %v1262 = vld [vmem:[#allocation3 + $0x31] sm:$0xff]
        %v1263 = vld [vmem:[#allocation3 + $0x41] sm:$0xff]
        %v1264 = vld [vmem:[#allocation3 + $0x51] sm:$0xff]
        %v1265 = vld [vmem:[#allocation3 + $0x61] sm:$0xff]
        %v1266 = vld [vmem:[#allocation3 + $0x71] sm:$0xff]
        %s1267 = scalar_lea.vmem %s3, 16
        %v1268 = vld [vmem:[%s1267] sm:$0xff]
        %v1269 = vld [vmem:[%s1267 + $0x8] sm:$0xff]
        %v1271 = vsel %vm1218, %v1259, 0
        %v1274 = vsel %vm1218, %v1260, 0
        %v1277 = vsel %vm1218, %v1261, 0
        %v1280 = vsel %vm1218, %v1262, 0
        %v1283 = vsel %vm1218, %v1263, 0
        %v1286 = vsel %vm1218, %v1264, 0
        %v1289 = vsel %vm1218, %v1265, 0
        %v1292 = vsel %vm1218, %v1266, 0
        %1294 = vmatpush.msra.mxu0 0.0
        %1295 = vmatpush.msra.mxu0 0.0
        %1296 = vmatpush.msra.mxu0 0.0
        %1297 = vmatpush.msra.mxu0 0.0
        %1298 = vmatpush.msra.mxu0 0.0
        %1299 = vmatpush.msra.mxu0 0.0
        %1300 = vmatpush.msra.mxu0 0.0
        %1301 = vmatpush.msra.mxu0 0.0
        %1302 = vmatpush.msra.mxu0 0.0
        %1303 = vmatpush.msra.mxu0 0.0
        %1304 = vmatpush.msra.mxu0 0.0
        %1305 = vmatpush.msra.mxu0 0.0
        %1306 = vmatpush.msra.mxu0 0.0
        %1307 = vmatpush.msra.mxu0 0.0
        %1308 = vmatpush.msra.mxu0 %v1269
        %1309 = vmatpush.msra.mxu0 %v1268
        %1310 = vmatmul.f32.gmra.mxu0 %v1271
        %v1311 = vpop.f32.mrf.mxu0
        %v1312 = vadd.f32 0.0, %v1311
        %1313 = vmatmul.f32.gmra.mxu0 %v1274
        %v1314 = vpop.f32.mrf.mxu0
        %v1315 = vadd.f32 0.0, %v1314
        %1316 = vmatmul.f32.gmra.mxu0 %v1277
        %v1317 = vpop.f32.mrf.mxu0
        %v1318 = vadd.f32 0.0, %v1317
        %1319 = vmatmul.f32.gmra.mxu0 %v1280
        %v1320 = vpop.f32.mrf.mxu0
        %v1321 = vadd.f32 0.0, %v1320
        %1322 = vmatmul.f32.gmra.mxu0 %v1283
        %v1323 = vpop.f32.mrf.mxu0
        %v1324 = vadd.f32 0.0, %v1323
        %1325 = vmatmul.f32.gmra.mxu0 %v1286
        %v1326 = vpop.f32.mrf.mxu0
        %v1327 = vadd.f32 0.0, %v1326
        %1328 = vmatmul.f32.gmra.mxu0 %v1289
        %v1329 = vpop.f32.mrf.mxu0
        %v1330 = vadd.f32 0.0, %v1329
        %1331 = vmatmul.f32.gmra.mxu0 %v1292
        %v1332 = vpop.f32.mrf.mxu0
        %v1333 = vadd.f32 0.0, %v1332
        %1334 = vdwg.mxu0
        %v1336 = vsel %vm1218, %v1249, 0
        %v1339 = vsel %vm1218, %v1250, 0
        %v1342 = vsel %vm1218, %v1251, 0
        %v1345 = vsel %vm1218, %v1252, 0
        %v1348 = vsel %vm1218, %v1253, 0
        %v1351 = vsel %vm1218, %v1254, 0
        %v1354 = vsel %vm1218, %v1255, 0
        %v1357 = vsel %vm1218, %v1256, 0
        %1359 = vmatpush.msra.mxu0 0.0
        %1360 = vmatpush.msra.mxu0 0.0
        %1361 = vmatpush.msra.mxu0 0.0
        %1362 = vmatpush.msra.mxu0 0.0
        %1363 = vmatpush.msra.mxu0 0.0
        %1364 = vmatpush.msra.mxu0 0.0
        %1365 = vmatpush.msra.mxu0 0.0
        %1366 = vmatpush.msra.mxu0 0.0
        %1367 = vmatpush.msra.mxu0 0.0
        %1368 = vmatpush.msra.mxu0 0.0
        %1369 = vmatpush.msra.mxu0 0.0
        %1370 = vmatpush.msra.mxu0 0.0
        %1371 = vmatpush.msra.mxu0 0.0
        %1372 = vmatpush.msra.mxu0 0.0
        %1373 = vmatpush.msra.mxu0 %v1258
        %1374 = vmatpush.msra.mxu0 %v1257
        %1375 = vmatmul.f32.gmra.mxu0 %v1336
        %v1376 = vpop.f32.mrf.mxu0
        %v1377 = vadd.f32 %v1312, %v1376
        %1378 = vmatmul.f32.gmra.mxu0 %v1339
        %v1379 = vpop.f32.mrf.mxu0
        %v1380 = vadd.f32 %v1315, %v1379
        %1381 = vmatmul.f32.gmra.mxu0 %v1342
        %v1382 = vpop.f32.mrf.mxu0
        %v1383 = vadd.f32 %v1318, %v1382
        %1384 = vmatmul.f32.gmra.mxu0 %v1345
        %v1385 = vpop.f32.mrf.mxu0
        %v1386 = vadd.f32 %v1321, %v1385
        %1387 = vmatmul.f32.gmra.mxu0 %v1348
        %v1388 = vpop.f32.mrf.mxu0
        %v1389 = vadd.f32 %v1324, %v1388
        %1390 = vmatmul.f32.gmra.mxu0 %v1351
        %v1391 = vpop.f32.mrf.mxu0
        %v1392 = vadd.f32 %v1327, %v1391
        %1393 = vmatmul.f32.gmra.mxu0 %v1354
        %v1394 = vpop.f32.mrf.mxu0
        %v1395 = vadd.f32 %v1330, %v1394
        %1396 = vmatmul.f32.gmra.mxu0 %v1357
        %v1397 = vpop.f32.mrf.mxu0
        %v1398 = vadd.f32 %v1333, %v1397
        %1399 = vdwg.mxu0
        %v1400 = vld [vmem:[#allocation3 + $0x2] sm:$0xff]
        %v1401 = vld [vmem:[#allocation3 + $0x12] sm:$0xff]
        %v1402 = vld [vmem:[#allocation3 + $0x22] sm:$0xff]
        %v1403 = vld [vmem:[#allocation3 + $0x32] sm:$0xff]
        %v1404 = vld [vmem:[#allocation3 + $0x42] sm:$0xff]
        %v1405 = vld [vmem:[#allocation3 + $0x52] sm:$0xff]
        %v1406 = vld [vmem:[#allocation3 + $0x62] sm:$0xff]
        %v1407 = vld [vmem:[#allocation3 + $0x72] sm:$0xff]
        %s1408 = scalar_lea.vmem %s3, 32
        %v1409 = vld [vmem:[%s1408] sm:$0xff]
        %v1410 = vld [vmem:[%s1408 + $0x8] sm:$0xff]
        %v1412 = vsel %vm1218, %v1400, 0
        %v1415 = vsel %vm1218, %v1401, 0
        %v1418 = vsel %vm1218, %v1402, 0
        %v1421 = vsel %vm1218, %v1403, 0
        %v1424 = vsel %vm1218, %v1404, 0
        %v1427 = vsel %vm1218, %v1405, 0
        %v1430 = vsel %vm1218, %v1406, 0
        %v1433 = vsel %vm1218, %v1407, 0
        %1435 = vmatpush.msra.mxu0 0.0
        %1436 = vmatpush.msra.mxu0 0.0
        %1437 = vmatpush.msra.mxu0 0.0
        %1438 = vmatpush.msra.mxu0 0.0
        %1439 = vmatpush.msra.mxu0 0.0
        %1440 = vmatpush.msra.mxu0 0.0
        %1441 = vmatpush.msra.mxu0 0.0
        %1442 = vmatpush.msra.mxu0 0.0
        %1443 = vmatpush.msra.mxu0 0.0
        %1444 = vmatpush.msra.mxu0 0.0
        %1445 = vmatpush.msra.mxu0 0.0
        %1446 = vmatpush.msra.mxu0 0.0
        %1447 = vmatpush.msra.mxu0 0.0
        %1448 = vmatpush.msra.mxu0 0.0
        %1449 = vmatpush.msra.mxu0 %v1410
        %1450 = vmatpush.msra.mxu0 %v1409
        %1451 = vmatmul.f32.gmra.mxu0 %v1412
        %v1452 = vpop.f32.mrf.mxu0
        %v1453 = vadd.f32 0.0, %v1452
        %1454 = vmatmul.f32.gmra.mxu0 %v1415
        %v1455 = vpop.f32.mrf.mxu0
        %v1456 = vadd.f32 0.0, %v1455
        %1457 = vmatmul.f32.gmra.mxu0 %v1418
        %v1458 = vpop.f32.mrf.mxu0
        %v1459 = vadd.f32 0.0, %v1458
        %1460 = vmatmul.f32.gmra.mxu0 %v1421
        %v1461 = vpop.f32.mrf.mxu0
        %v1462 = vadd.f32 0.0, %v1461
        %1463 = vmatmul.f32.gmra.mxu0 %v1424
        %v1464 = vpop.f32.mrf.mxu0
        %v1465 = vadd.f32 0.0, %v1464
        %1466 = vmatmul.f32.gmra.mxu0 %v1427
        %v1467 = vpop.f32.mrf.mxu0
        %v1468 = vadd.f32 0.0, %v1467
        %1469 = vmatmul.f32.gmra.mxu0 %v1430
        %v1470 = vpop.f32.mrf.mxu0
        %v1471 = vadd.f32 0.0, %v1470
        %1472 = vmatmul.f32.gmra.mxu0 %v1433
        %v1473 = vpop.f32.mrf.mxu0
        %v1474 = vadd.f32 0.0, %v1473
        %1475 = vdwg.mxu0
        %v1476 = vadd.f32 %v1377, %v1453
        %v1477 = vadd.f32 %v1380, %v1456
        %v1478 = vadd.f32 %v1383, %v1459
        %v1479 = vadd.f32 %v1386, %v1462
        %v1480 = vadd.f32 %v1389, %v1465
        %v1481 = vadd.f32 %v1392, %v1468
        %v1482 = vadd.f32 %v1395, %v1471
        %v1483 = vadd.f32 %v1398, %v1474
        %v1484 = vld [vmem:[%s1240] sm:$0xff]
        %v1485 = vld [vmem:[%s1240 + $0x10] sm:$0xff]
        %v1486 = vld [vmem:[%s1240 + $0x20] sm:$0xff]
        %v1487 = vld [vmem:[%s1240 + $0x30] sm:$0xff]
        %v1488 = vld [vmem:[%s1240 + $0x40] sm:$0xff]
        %v1489 = vld [vmem:[%s1240 + $0x50] sm:$0xff]
        %v1490 = vld [vmem:[%s1240 + $0x60] sm:$0xff]
        %v1491 = vld [vmem:[%s1240 + $0x70] sm:$0xff]
        %s1492 = scalar_lea.vmem %s3, 48
        %v1493 = vld [vmem:[%s1492] sm:$0xff]
        %v1494 = vld [vmem:[%s1492 + $0x8] sm:$0xff]
        %v1496 = vsel %vm1218, %v1484, 0
        %v1499 = vsel %vm1218, %v1485, 0
        %v1502 = vsel %vm1218, %v1486, 0
        %v1505 = vsel %vm1218, %v1487, 0
        %v1508 = vsel %vm1218, %v1488, 0
        %v1511 = vsel %vm1218, %v1489, 0
        %v1514 = vsel %vm1218, %v1490, 0
        %v1517 = vsel %vm1218, %v1491, 0
        %1519 = vmatpush.msra.mxu0 0.0
        %1520 = vmatpush.msra.mxu0 0.0
        %1521 = vmatpush.msra.mxu0 0.0
        %1522 = vmatpush.msra.mxu0 0.0
        %1523 = vmatpush.msra.mxu0 0.0
        %1524 = vmatpush.msra.mxu0 0.0
        %1525 = vmatpush.msra.mxu0 0.0
        %1526 = vmatpush.msra.mxu0 0.0
        %1527 = vmatpush.msra.mxu0 0.0
        %1528 = vmatpush.msra.mxu0 0.0
        %1529 = vmatpush.msra.mxu0 0.0
        %1530 = vmatpush.msra.mxu0 0.0
        %1531 = vmatpush.msra.mxu0 0.0
        %1532 = vmatpush.msra.mxu0 0.0
        %1533 = vmatpush.msra.mxu0 %v1494
        %1534 = vmatpush.msra.mxu0 %v1493
        %1535 = vmatmul.f32.gmra.mxu0 %v1496
        %v1536 = vpop.f32.mrf.mxu0
        %v1537 = vadd.f32 0.0, %v1536
        %1538 = vmatmul.f32.gmra.mxu0 %v1499
        %v1539 = vpop.f32.mrf.mxu0
        %v1540 = vadd.f32 0.0, %v1539
        %1541 = vmatmul.f32.gmra.mxu0 %v1502
        %v1542 = vpop.f32.mrf.mxu0
        %v1543 = vadd.f32 0.0, %v1542
        %1544 = vmatmul.f32.gmra.mxu0 %v1505
        %v1545 = vpop.f32.mrf.mxu0
        %v1546 = vadd.f32 0.0, %v1545
        %1547 = vmatmul.f32.gmra.mxu0 %v1508
        %v1548 = vpop.f32.mrf.mxu0
        %v1549 = vadd.f32 0.0, %v1548
        %1550 = vmatmul.f32.gmra.mxu0 %v1511
        %v1551 = vpop.f32.mrf.mxu0
        %v1552 = vadd.f32 0.0, %v1551
        %1553 = vmatmul.f32.gmra.mxu0 %v1514
        %v1554 = vpop.f32.mrf.mxu0
        %v1555 = vadd.f32 0.0, %v1554
        %1556 = vmatmul.f32.gmra.mxu0 %v1517
        %v1557 = vpop.f32.mrf.mxu0
        %v1558 = vadd.f32 0.0, %v1557
        %1559 = vdwg.mxu0
        %v1560 = vadd.f32 %v1476, %v1537
        %v1561 = vadd.f32 %v1477, %v1540
        %v1562 = vadd.f32 %v1478, %v1543
        %v1563 = vadd.f32 %v1479, %v1546
        %v1564 = vadd.f32 %v1480, %v1549
        %v1565 = vadd.f32 %v1481, %v1552
        %v1566 = vadd.f32 %v1482, %v1555
        %v1567 = vadd.f32 %v1483, %v1558
        %v1568 = vld [vmem:[%s1240 + $0x1] sm:$0xff]
        %v1569 = vld [vmem:[%s1240 + $0x11] sm:$0xff]
        %v1570 = vld [vmem:[%s1240 + $0x21] sm:$0xff]
        %v1571 = vld [vmem:[%s1240 + $0x31] sm:$0xff]
        %v1572 = vld [vmem:[%s1240 + $0x41] sm:$0xff]
        %v1573 = vld [vmem:[%s1240 + $0x51] sm:$0xff]
        %v1574 = vld [vmem:[%s1240 + $0x61] sm:$0xff]
        %v1575 = vld [vmem:[%s1240 + $0x71] sm:$0xff]
        %s1576 = scalar_lea.vmem %s3, 64
        %v1577 = vld [vmem:[%s1576] sm:$0xff]
        %v1578 = vld [vmem:[%s1576 + $0x8] sm:$0xff]
        %v1580 = vsel %vm1218, %v1568, 0
        %v1583 = vsel %vm1218, %v1569, 0
        %v1586 = vsel %vm1218, %v1570, 0
        %v1589 = vsel %vm1218, %v1571, 0
        %v1592 = vsel %vm1218, %v1572, 0
        %v1595 = vsel %vm1218, %v1573, 0
        %v1598 = vsel %vm1218, %v1574, 0
        %v1601 = vsel %vm1218, %v1575, 0
        %1603 = vmatpush.msra.mxu0 0.0
        %1604 = vmatpush.msra.mxu0 0.0
        %1605 = vmatpush.msra.mxu0 0.0
        %1606 = vmatpush.msra.mxu0 0.0
        %1607 = vmatpush.msra.mxu0 0.0
        %1608 = vmatpush.msra.mxu0 0.0
        %1609 = vmatpush.msra.mxu0 0.0
        %1610 = vmatpush.msra.mxu0 0.0
        %1611 = vmatpush.msra.mxu0 0.0
        %1612 = vmatpush.msra.mxu0 0.0
        %1613 = vmatpush.msra.mxu0 0.0
        %1614 = vmatpush.msra.mxu0 0.0
        %1615 = vmatpush.msra.mxu0 0.0
        %1616 = vmatpush.msra.mxu0 0.0
        %1617 = vmatpush.msra.mxu0 %v1578
        %1618 = vmatpush.msra.mxu0 %v1577
        %1619 = vmatmul.f32.gmra.mxu0 %v1580
        %v1620 = vpop.f32.mrf.mxu0
        %v1621 = vadd.f32 0.0, %v1620
        %1622 = vmatmul.f32.gmra.mxu0 %v1583
        %v1623 = vpop.f32.mrf.mxu0
        %v1624 = vadd.f32 0.0, %v1623
        %1625 = vmatmul.f32.gmra.mxu0 %v1586
        %v1626 = vpop.f32.mrf.mxu0
        %v1627 = vadd.f32 0.0, %v1626
        %1628 = vmatmul.f32.gmra.mxu0 %v1589
        %v1629 = vpop.f32.mrf.mxu0
        %v1630 = vadd.f32 0.0, %v1629
        %1631 = vmatmul.f32.gmra.mxu0 %v1592
        %v1632 = vpop.f32.mrf.mxu0
        %v1633 = vadd.f32 0.0, %v1632
        %1634 = vmatmul.f32.gmra.mxu0 %v1595
        %v1635 = vpop.f32.mrf.mxu0
        %v1636 = vadd.f32 0.0, %v1635
        %1637 = vmatmul.f32.gmra.mxu0 %v1598
        %v1638 = vpop.f32.mrf.mxu0
        %v1639 = vadd.f32 0.0, %v1638
        %1640 = vmatmul.f32.gmra.mxu0 %v1601
        %v1641 = vpop.f32.mrf.mxu0
        %v1642 = vadd.f32 0.0, %v1641
        %1643 = vdwg.mxu0
        %v1644 = vadd.f32 %v1560, %v1621
        %v1645 = vadd.f32 %v1561, %v1624
        %v1646 = vadd.f32 %v1562, %v1627
        %v1647 = vadd.f32 %v1563, %v1630
        %v1648 = vadd.f32 %v1564, %v1633
        %v1649 = vadd.f32 %v1565, %v1636
        %v1650 = vadd.f32 %v1566, %v1639
        %v1651 = vadd.f32 %v1567, %v1642
        %v1652 = vld [vmem:[%s1240 + $0x2] sm:$0xff]
        %v1653 = vld [vmem:[%s1240 + $0x12] sm:$0xff]
        %v1654 = vld [vmem:[%s1240 + $0x22] sm:$0xff]
        %v1655 = vld [vmem:[%s1240 + $0x32] sm:$0xff]
        %v1656 = vld [vmem:[%s1240 + $0x42] sm:$0xff]
        %v1657 = vld [vmem:[%s1240 + $0x52] sm:$0xff]
        %v1658 = vld [vmem:[%s1240 + $0x62] sm:$0xff]
        %v1659 = vld [vmem:[%s1240 + $0x72] sm:$0xff]
        %s1660 = scalar_lea.vmem %s3, 80
        %v1661 = vld [vmem:[%s1660] sm:$0xff]
        %v1662 = vld [vmem:[%s1660 + $0x8] sm:$0xff]
        %v1664 = vsel %vm1218, %v1652, 0
        %v1667 = vsel %vm1218, %v1653, 0
        %v1670 = vsel %vm1218, %v1654, 0
        %v1673 = vsel %vm1218, %v1655, 0
        %v1676 = vsel %vm1218, %v1656, 0
        %v1679 = vsel %vm1218, %v1657, 0
        %v1682 = vsel %vm1218, %v1658, 0
        %v1685 = vsel %vm1218, %v1659, 0
        %1687 = vmatpush.msra.mxu0 0.0
        %1688 = vmatpush.msra.mxu0 0.0
        %1689 = vmatpush.msra.mxu0 0.0
        %1690 = vmatpush.msra.mxu0 0.0
        %1691 = vmatpush.msra.mxu0 0.0
        %1692 = vmatpush.msra.mxu0 0.0
        %1693 = vmatpush.msra.mxu0 0.0
        %1694 = vmatpush.msra.mxu0 0.0
        %1695 = vmatpush.msra.mxu0 0.0
        %1696 = vmatpush.msra.mxu0 0.0
        %1697 = vmatpush.msra.mxu0 0.0
        %1698 = vmatpush.msra.mxu0 0.0
        %1699 = vmatpush.msra.mxu0 0.0
        %1700 = vmatpush.msra.mxu0 0.0
        %1701 = vmatpush.msra.mxu0 %v1662
        %1702 = vmatpush.msra.mxu0 %v1661
        %1703 = vmatmul.f32.gmra.mxu0 %v1664
        %v1704 = vpop.f32.mrf.mxu0
        %v1705 = vadd.f32 0.0, %v1704
        %1706 = vmatmul.f32.gmra.mxu0 %v1667
        %v1707 = vpop.f32.mrf.mxu0
        %v1708 = vadd.f32 0.0, %v1707
        %1709 = vmatmul.f32.gmra.mxu0 %v1670
        %v1710 = vpop.f32.mrf.mxu0
        %v1711 = vadd.f32 0.0, %v1710
        %1712 = vmatmul.f32.gmra.mxu0 %v1673
        %v1713 = vpop.f32.mrf.mxu0
        %v1714 = vadd.f32 0.0, %v1713
        %1715 = vmatmul.f32.gmra.mxu0 %v1676
        %v1716 = vpop.f32.mrf.mxu0
        %v1717 = vadd.f32 0.0, %v1716
        %1718 = vmatmul.f32.gmra.mxu0 %v1679
        %v1719 = vpop.f32.mrf.mxu0
        %v1720 = vadd.f32 0.0, %v1719
        %1721 = vmatmul.f32.gmra.mxu0 %v1682
        %v1722 = vpop.f32.mrf.mxu0
        %v1723 = vadd.f32 0.0, %v1722
        %1724 = vmatmul.f32.gmra.mxu0 %v1685
        %v1725 = vpop.f32.mrf.mxu0
        %v1726 = vadd.f32 0.0, %v1725
        %1727 = vdwg.mxu0
        %v1728 = vadd.f32 %v1644, %v1705
        %v1729 = vadd.f32 %v1645, %v1708
        %v1730 = vadd.f32 %v1646, %v1711
        %v1731 = vadd.f32 %v1647, %v1714
        %v1732 = vadd.f32 %v1648, %v1717
        %v1733 = vadd.f32 %v1649, %v1720
        %v1734 = vadd.f32 %v1650, %v1723
        %v1735 = vadd.f32 %v1651, %v1726
        %s1736 = scalar_lea.vmem [#allocation3], 32
        %v1737 = vld [vmem:[%s1736] sm:$0xff]
        %v1738 = vld [vmem:[%s1736 + $0x10] sm:$0xff]
        %v1739 = vld [vmem:[%s1736 + $0x20] sm:$0xff]
        %v1740 = vld [vmem:[%s1736 + $0x30] sm:$0xff]
        %v1741 = vld [vmem:[%s1736 + $0x40] sm:$0xff]
        %v1742 = vld [vmem:[%s1736 + $0x50] sm:$0xff]
        %v1743 = vld [vmem:[%s1736 + $0x60] sm:$0xff]
        %v1744 = vld [vmem:[%s1736 + $0x70] sm:$0xff]
        %s1745 = scalar_lea.vmem %s3, 96
        %v1746 = vld [vmem:[%s1745] sm:$0xff]
        %v1747 = vld [vmem:[%s1745 + $0x8] sm:$0xff]
        %v1749 = vsel %vm1218, %v1737, 0
        %v1752 = vsel %vm1218, %v1738, 0
        %v1755 = vsel %vm1218, %v1739, 0
        %v1758 = vsel %vm1218, %v1740, 0
        %v1761 = vsel %vm1218, %v1741, 0
        %v1764 = vsel %vm1218, %v1742, 0
        %v1767 = vsel %vm1218, %v1743, 0
        %v1770 = vsel %vm1218, %v1744, 0
        %1772 = vmatpush.msra.mxu0 0.0
        %1773 = vmatpush.msra.mxu0 0.0
        %1774 = vmatpush.msra.mxu0 0.0
        %1775 = vmatpush.msra.mxu0 0.0
        %1776 = vmatpush.msra.mxu0 0.0
        %1777 = vmatpush.msra.mxu0 0.0
        %1778 = vmatpush.msra.mxu0 0.0
        %1779 = vmatpush.msra.mxu0 0.0
        %1780 = vmatpush.msra.mxu0 0.0
        %1781 = vmatpush.msra.mxu0 0.0
        %1782 = vmatpush.msra.mxu0 0.0
        %1783 = vmatpush.msra.mxu0 0.0
        %1784 = vmatpush.msra.mxu0 0.0
        %1785 = vmatpush.msra.mxu0 0.0
        %1786 = vmatpush.msra.mxu0 %v1747
        %1787 = vmatpush.msra.mxu0 %v1746
        %1788 = vmatmul.f32.gmra.mxu0 %v1749
        %v1789 = vpop.f32.mrf.mxu0
        %v1790 = vadd.f32 0.0, %v1789
        %1791 = vmatmul.f32.gmra.mxu0 %v1752
        %v1792 = vpop.f32.mrf.mxu0
        %v1793 = vadd.f32 0.0, %v1792
        %1794 = vmatmul.f32.gmra.mxu0 %v1755
        %v1795 = vpop.f32.mrf.mxu0
        %v1796 = vadd.f32 0.0, %v1795
        %1797 = vmatmul.f32.gmra.mxu0 %v1758
        %v1798 = vpop.f32.mrf.mxu0
        %v1799 = vadd.f32 0.0, %v1798
        %1800 = vmatmul.f32.gmra.mxu0 %v1761
        %v1801 = vpop.f32.mrf.mxu0
        %v1802 = vadd.f32 0.0, %v1801
        %1803 = vmatmul.f32.gmra.mxu0 %v1764
        %v1804 = vpop.f32.mrf.mxu0
        %v1805 = vadd.f32 0.0, %v1804
        %1806 = vmatmul.f32.gmra.mxu0 %v1767
        %v1807 = vpop.f32.mrf.mxu0
        %v1808 = vadd.f32 0.0, %v1807
        %1809 = vmatmul.f32.gmra.mxu0 %v1770
        %v1810 = vpop.f32.mrf.mxu0
        %v1811 = vadd.f32 0.0, %v1810
        %1812 = vdwg.mxu0
        %v1813 = vadd.f32 %v1728, %v1790
        %v1814 = vadd.f32 %v1729, %v1793
        %v1815 = vadd.f32 %v1730, %v1796
        %v1816 = vadd.f32 %v1731, %v1799
        %v1817 = vadd.f32 %v1732, %v1802
        %v1818 = vadd.f32 %v1733, %v1805
        %v1819 = vadd.f32 %v1734, %v1808
        %v1820 = vadd.f32 %v1735, %v1811
        %v1821 = vld [vmem:[%s1736 + $0x1] sm:$0xff]
        %v1822 = vld [vmem:[%s1736 + $0x11] sm:$0xff]
        %v1823 = vld [vmem:[%s1736 + $0x21] sm:$0xff]
        %v1824 = vld [vmem:[%s1736 + $0x31] sm:$0xff]
        %v1825 = vld [vmem:[%s1736 + $0x41] sm:$0xff]
        %v1826 = vld [vmem:[%s1736 + $0x51] sm:$0xff]
        %v1827 = vld [vmem:[%s1736 + $0x61] sm:$0xff]
        %v1828 = vld [vmem:[%s1736 + $0x71] sm:$0xff]
        %s1829 = scalar_lea.vmem %s3, 112
        %v1830 = vld [vmem:[%s1829] sm:$0xff]
        %v1831 = vld [vmem:[%s1829 + $0x8] sm:$0xff]
        %v1833 = vsel %vm1218, %v1821, 0
        %v1836 = vsel %vm1218, %v1822, 0
        %v1839 = vsel %vm1218, %v1823, 0
        %v1842 = vsel %vm1218, %v1824, 0
        %v1845 = vsel %vm1218, %v1825, 0
        %v1848 = vsel %vm1218, %v1826, 0
        %v1851 = vsel %vm1218, %v1827, 0
        %v1854 = vsel %vm1218, %v1828, 0
        %1856 = vmatpush.msra.mxu0 0.0
        %1857 = vmatpush.msra.mxu0 0.0
        %1858 = vmatpush.msra.mxu0 0.0
        %1859 = vmatpush.msra.mxu0 0.0
        %1860 = vmatpush.msra.mxu0 0.0
        %1861 = vmatpush.msra.mxu0 0.0
        %1862 = vmatpush.msra.mxu0 0.0
        %1863 = vmatpush.msra.mxu0 0.0
        %1864 = vmatpush.msra.mxu0 0.0
        %1865 = vmatpush.msra.mxu0 0.0
        %1866 = vmatpush.msra.mxu0 0.0
        %1867 = vmatpush.msra.mxu0 0.0
        %1868 = vmatpush.msra.mxu0 0.0
        %1869 = vmatpush.msra.mxu0 0.0
        %1870 = vmatpush.msra.mxu0 %v1831
        %1871 = vmatpush.msra.mxu0 %v1830
        %1872 = vmatmul.f32.gmra.mxu0 %v1833
        %v1873 = vpop.f32.mrf.mxu0
        %v1874 = vadd.f32 0.0, %v1873
        %1875 = vmatmul.f32.gmra.mxu0 %v1836
        %v1876 = vpop.f32.mrf.mxu0
        %v1877 = vadd.f32 0.0, %v1876
        %1878 = vmatmul.f32.gmra.mxu0 %v1839
        %v1879 = vpop.f32.mrf.mxu0
        %v1880 = vadd.f32 0.0, %v1879
        %1881 = vmatmul.f32.gmra.mxu0 %v1842
        %v1882 = vpop.f32.mrf.mxu0
        %v1883 = vadd.f32 0.0, %v1882
        %1884 = vmatmul.f32.gmra.mxu0 %v1845
        %v1885 = vpop.f32.mrf.mxu0
        %v1886 = vadd.f32 0.0, %v1885
        %1887 = vmatmul.f32.gmra.mxu0 %v1848
        %v1888 = vpop.f32.mrf.mxu0
        %v1889 = vadd.f32 0.0, %v1888
        %1890 = vmatmul.f32.gmra.mxu0 %v1851
        %v1891 = vpop.f32.mrf.mxu0
        %v1892 = vadd.f32 0.0, %v1891
        %1893 = vmatmul.f32.gmra.mxu0 %v1854
        %v1894 = vpop.f32.mrf.mxu0
        %v1895 = vadd.f32 0.0, %v1894
        %1896 = vdwg.mxu0
        %v1897 = vadd.f32 %v1813, %v1874
        %v1898 = vadd.f32 %v1814, %v1877
        %v1899 = vadd.f32 %v1815, %v1880
        %v1900 = vadd.f32 %v1816, %v1883
        %v1901 = vadd.f32 %v1817, %v1886
        %v1902 = vadd.f32 %v1818, %v1889
        %v1903 = vadd.f32 %v1819, %v1892
        %v1904 = vadd.f32 %v1820, %v1895
        %v1905 = vld [vmem:[%s1736 + $0x2] sm:$0xff]
        %v1906 = vld [vmem:[%s1736 + $0x12] sm:$0xff]
        %v1907 = vld [vmem:[%s1736 + $0x22] sm:$0xff]
        %v1908 = vld [vmem:[%s1736 + $0x32] sm:$0xff]
        %v1909 = vld [vmem:[%s1736 + $0x42] sm:$0xff]
        %v1910 = vld [vmem:[%s1736 + $0x52] sm:$0xff]
        %v1911 = vld [vmem:[%s1736 + $0x62] sm:$0xff]
        %v1912 = vld [vmem:[%s1736 + $0x72] sm:$0xff]
        %s1913 = scalar_lea.vmem %s3, 128
        %v1914 = vld [vmem:[%s1913] sm:$0xff]
        %v1915 = vld [vmem:[%s1913 + $0x8] sm:$0xff]
        %v1917 = vsel %vm1218, %v1905, 0
        %v1920 = vsel %vm1218, %v1906, 0
        %v1923 = vsel %vm1218, %v1907, 0
        %v1926 = vsel %vm1218, %v1908, 0
        %v1929 = vsel %vm1218, %v1909, 0
        %v1932 = vsel %vm1218, %v1910, 0
        %v1935 = vsel %vm1218, %v1911, 0
        %v1938 = vsel %vm1218, %v1912, 0
        %1940 = vmatpush.msra.mxu0 0.0
        %1941 = vmatpush.msra.mxu0 0.0
        %1942 = vmatpush.msra.mxu0 0.0
        %1943 = vmatpush.msra.mxu0 0.0
        %1944 = vmatpush.msra.mxu0 0.0
        %1945 = vmatpush.msra.mxu0 0.0
        %1946 = vmatpush.msra.mxu0 0.0
        %1947 = vmatpush.msra.mxu0 0.0
        %1948 = vmatpush.msra.mxu0 0.0
        %1949 = vmatpush.msra.mxu0 0.0
        %1950 = vmatpush.msra.mxu0 0.0
        %1951 = vmatpush.msra.mxu0 0.0
        %1952 = vmatpush.msra.mxu0 0.0
        %1953 = vmatpush.msra.mxu0 0.0
        %1954 = vmatpush.msra.mxu0 %v1915
        %1955 = vmatpush.msra.mxu0 %v1914
        %1956 = vmatmul.f32.gmra.mxu0 %v1917
        %v1957 = vpop.f32.mrf.mxu0
        %v1958 = vadd.f32 0.0, %v1957
        %1959 = vmatmul.f32.gmra.mxu0 %v1920
        %v1960 = vpop.f32.mrf.mxu0
        %v1961 = vadd.f32 0.0, %v1960
        %1962 = vmatmul.f32.gmra.mxu0 %v1923
        %v1963 = vpop.f32.mrf.mxu0
        %v1964 = vadd.f32 0.0, %v1963
        %1965 = vmatmul.f32.gmra.mxu0 %v1926
        %v1966 = vpop.f32.mrf.mxu0
        %v1967 = vadd.f32 0.0, %v1966
        %1968 = vmatmul.f32.gmra.mxu0 %v1929
        %v1969 = vpop.f32.mrf.mxu0
        %v1970 = vadd.f32 0.0, %v1969
        %1971 = vmatmul.f32.gmra.mxu0 %v1932
        %v1972 = vpop.f32.mrf.mxu0
        %v1973 = vadd.f32 0.0, %v1972
        %1974 = vmatmul.f32.gmra.mxu0 %v1935
        %v1975 = vpop.f32.mrf.mxu0
        %v1976 = vadd.f32 0.0, %v1975
        %1977 = vmatmul.f32.gmra.mxu0 %v1938
        %v1978 = vpop.f32.mrf.mxu0
        %v1979 = vadd.f32 0.0, %v1978
        %1980 = vdwg.mxu0
        %v1981 = vadd.f32 %v1897, %v1958
        %v1982 = vadd.f32 %v1898, %v1961
        %v1983 = vadd.f32 %v1899, %v1964
        %v1984 = vadd.f32 %v1900, %v1967
        %v1985 = vadd.f32 %v1901, %v1970
        %v1986 = vadd.f32 %v1902, %v1973
        %v1987 = vadd.f32 %v1903, %v1976
        %v1988 = vadd.f32 %v1904, %v1979
        %v1989 = vld [vmem:[%s4] sm:$0x1]
        %v1991 = vperm.slane %v1989, 0
        %v1993 = vadd.f32 %v1981, %v1991
        %v1994 = vadd.f32 %v1982, %v1991
        %v1995 = vadd.f32 %v1983, %v1991
        %v1996 = vadd.f32 %v1984, %v1991
        %v1997 = vadd.f32 %v1985, %v1991
        %v1998 = vadd.f32 %v1986, %v1991
        %v1999 = vadd.f32 %v1987, %v1991
        %v2000 = vadd.f32 %v1988, %v1991
        %v2001 = vld [vmem:[%s743] ss:$2 sm:$0xff]
        %v2002 = vld [vmem:[%s745] ss:$2 sm:$0xff]
        %v2003 = vld [vmem:[%s747] ss:$2 sm:$0xff]
        %v2004 = vld [vmem:[%s749] ss:$2 sm:$0xff]
        %v2005 = vld [vmem:[%s751] ss:$2 sm:$0xff]
        %v2006 = vld [vmem:[%s753] ss:$2 sm:$0xff]
        %v2007 = vld [vmem:[%s755] ss:$2 sm:$0xff]
        %v2008 = vld [vmem:[%s757] ss:$2 sm:$0xff]
        %v2009 = vld [vmem:[%s5] sm:$0xff]
        %v2010 = vld [vmem:[%s6] sm:$0x1]
        %v2012 = vperm.slane %v2010, 0
        %v2015 = vsel %vm277, %v2001, 0
        %v2018 = vsel %vm277, %v2002, 0
        %v2021 = vsel %vm277, %v2003, 0
        %v2024 = vsel %vm277, %v2004, 0
        %v2027 = vsel %vm277, %v2005, 0
        %v2030 = vsel %vm277, %v2006, 0
        %v2033 = vsel %vm277, %v2007, 0
        %v2036 = vsel %vm277, %v2008, 0
        %2038 = vmatpush.msra.mxu0 0.0
        %2039 = vmatpush.msra.mxu0 0.0
        %2040 = vmatpush.msra.mxu0 0.0
        %2041 = vmatpush.msra.mxu0 0.0
        %2042 = vmatpush.msra.mxu0 0.0
        %2043 = vmatpush.msra.mxu0 0.0
        %2044 = vmatpush.msra.mxu0 0.0
        %2045 = vmatpush.msra.mxu0 0.0
        %2046 = vmatpush.msra.mxu0 0.0
        %2047 = vmatpush.msra.mxu0 0.0
        %2048 = vmatpush.msra.mxu0 0.0
        %2049 = vmatpush.msra.mxu0 0.0
        %2050 = vmatpush.msra.mxu0 0.0
        %2051 = vmatpush.msra.mxu0 0.0
        %2052 = vmatpush.msra.mxu0 0.0
        %2053 = vmatpush.msra.mxu0 %v2009
        %2054 = vmatmul.f32.gmra.mxu0 %v2015
        %v2055 = vpop.f32.mrf.mxu0
        %v2056 = vadd.f32 %v2012, %v2055
        %2057 = vmatmul.f32.gmra.mxu0 %v2018
        %v2058 = vpop.f32.mrf.mxu0
        %v2059 = vadd.f32 %v2012, %v2058
        %2060 = vmatmul.f32.gmra.mxu0 %v2021
        %v2061 = vpop.f32.mrf.mxu0
        %v2062 = vadd.f32 %v2012, %v2061
        %2063 = vmatmul.f32.gmra.mxu0 %v2024
        %v2064 = vpop.f32.mrf.mxu0
        %v2065 = vadd.f32 %v2012, %v2064
        %2066 = vmatmul.f32.gmra.mxu0 %v2027
        %v2067 = vpop.f32.mrf.mxu0
        %v2068 = vadd.f32 %v2012, %v2067
        %2069 = vmatmul.f32.gmra.mxu0 %v2030
        %v2070 = vpop.f32.mrf.mxu0
        %v2071 = vadd.f32 %v2012, %v2070
        %2072 = vmatmul.f32.gmra.mxu0 %v2033
        %v2073 = vpop.f32.mrf.mxu0
        %v2074 = vadd.f32 %v2012, %v2073
        %2075 = vmatmul.f32.gmra.mxu0 %v2036
        %v2076 = vpop.f32.mrf.mxu0
        %v2077 = vadd.f32 %v2012, %v2076
        %2078 = vdwg.mxu0
        %v2079 = vadd.f32 %v1993, %v2056
        %v2080 = vadd.f32 %v1994, %v2059
        %v2081 = vadd.f32 %v1995, %v2062
        %v2082 = vadd.f32 %v1996, %v2065
        %v2083 = vadd.f32 %v1997, %v2068
        %v2084 = vadd.f32 %v1998, %v2071
        %v2085 = vadd.f32 %v1999, %v2074
        %v2086 = vadd.f32 %v2000, %v2077
        %v2087 = vmax.f32 %v2079, 0.0
        %v2088 = vmax.f32 %v2080, 0.0
        %v2089 = vmax.f32 %v2081, 0.0
        %v2090 = vmax.f32 %v2082, 0.0
        %v2091 = vmax.f32 %v2083, 0.0
        %v2092 = vmax.f32 %v2084, 0.0
        %v2093 = vmax.f32 %v2085, 0.0
        %v2094 = vmax.f32 %v2086, 0.0
        %2095 = vst.msk [vmem:[%s271] sm:$0xff] %vm1218, %v2087
        %2096 = vst.msk [vmem:[%s271 + $0x8] sm:$0xff] %vm1218, %v2088
        %2097 = vst.msk [vmem:[%s271 + $0x10] sm:$0xff] %vm1218, %v2089
        %2098 = vst.msk [vmem:[%s271 + $0x18] sm:$0xff] %vm1218, %v2090
        %2099 = vst.msk [vmem:[%s271 + $0x20] sm:$0xff] %vm1218, %v2091
        %2100 = vst.msk [vmem:[%s271 + $0x28] sm:$0xff] %vm1218, %v2092
        %2101 = vst.msk [vmem:[%s271 + $0x30] sm:$0xff] %vm1218, %v2093
        %2102 = vst.msk [vmem:[%s271 + $0x38] sm:$0xff] %vm1218, %v2094
        %s2103 = sand.u32 %s181, 1
        %s2104 = scalar_lea.sflag [#allocation5], %s2103
        %s2105 = sand.u32 %s181, 1
        %s2106 = smul.addr %s2105, 64
        %s2107 = scalar_lea.vmem [#allocation4], %s2106
        // Predicated region
        $region49: #{basic_block_forward.1} parent=47 // pred_check
          %p2108 = pneg %p191
        $region50: #{basic_block_forward.1} parent=47 // pred_check_branch
          %2110 = sbr.rel (%p2108) target = $region52
        $region51: #{basic_block_forward.1} parent=47 // pred_region
          %2112 = vsyncadd %s2104, 0
          %s2113 = smul.addr %s21, 8
          %s2114 = smul.addr %s2113, 8
          %s2115 = scalar_lea.hbm %s7, %s2114
          %s2116 = sshll.u32 %s2107, 4
          %s2117 = int_to_ptr.vmem [resolvable:$true] %s2116
          %s2118 = sshll.u32 %s2115, 4
          %s2119 = int_to_ptr.hbm [resolvable:$true] %s2118
          %2124 = dma.vmem_to_hbm [thread:$0]  %s2117, 1024, %s2119, %s2104, 128, 128, 8
        $region52: #{basic_block_forward.1} parent=47 // pred_fallthru
          _
      $region48: #{basic_block_forward.1} parent=5 // pred_fallthru
        _
      %p2125 = scmp.le.s32.totalorder 2, %s16
      // Predicated region
      $region53: #{basic_block_forward.1} parent=5 // pred_check
        %p2126 = pneg %p2125
      $region54: #{basic_block_forward.1} parent=5 // pred_check_branch
        %2128 = sbr.rel (%p2126) target = $region56
      $region55: #{basic_block_forward.1} parent=5 // pred_region
        %s2129 = ssub.s32 %s16, 2
        // Predicated region
        $region57: #{basic_block_forward.1} parent=55 // pred_check
          %p2130 = pneg %p197
        $region58: #{basic_block_forward.1} parent=55 // pred_check_branch
          %2132 = sbr.rel (%p2130) target = $region60
        $region59: #{basic_block_forward.1} parent=55 // pred_region
          %s2133 = sand.u32 %s182, 1
          %s2134 = scalar_lea.sflag [#allocation5], %s2133
          %s2135 = sand.u32 %s182, 1
          %s2136 = smul.addr %s2135, 64
          %s2137 = scalar_lea.vmem [#allocation4], %s2136
          %2139 = dma.done %s2134, 1024
        $region60: #{basic_block_forward.1} parent=55 // pred_fallthru
          _
      $region56: #{basic_block_forward.1} parent=5 // pred_fallthru
        _
    $region6: #{basic_block_forward.1} parent=1 // loop_footer
      %s20 = sadd.s32 1, %s16
    $region7: #{basic_block_forward.1} parent=1 // loop_footer_branch
      %15 = sbr.rel target = $region3
    $region8: #{basic_block_forward.1} parent=1 // loop_exit
      _
    %2140 = vsyncpa [#allocation5], 1
    %s2141 = scalar_lea.sflag [#allocation5], 1
    %2142 = vsyncpa %s2141, 1

</llo_original>
